<compile_context>
chip_gen: v7x
topology: tpu7x:2x2x1
jax: 0.10.0
libtpu: 0.0.40
codegen_flags: <defaults>
</compile_context>

<pallas_src>
import jax
import jax.numpy as jnp
from jax import lax
from jax.experimental import pallas as pl
from jax.experimental.pallas import tpu as pltpu


def _pick_group(n_pos, w_len, c_dim, batch, vmem_budget_bytes=8 * 1024 * 1024):
    """Largest divisor G of n_pos whose per-step working set (double-buffered
    blocks + main temporaries, f32) fits the VMEM budget.  Keeps >= 2 total
    grid steps when possible (one per v7x TensorCore)."""
    fits = []
    for g in range(1, n_pos + 1):
        if n_pos % g:
            continue
        gc = g * c_dim
        if gc % 8 and g != n_pos:          # blocked second-minor dim: 8-aligned
            continue
        est = 4 * (4 * gc * w_len          # x block + out block, double-buffered
                   + 2 * 3 * gc * gc       # block-diagonal qkv weight
                   + 2 * gc * gc           # additive softmax mask
                   + 2 * 3 * gc * 128      # bias column (lane-padded)
                   + 3 * gc * w_len        # qkv intermediate
                   + 3 * gc * gc           # scores / exp / attn weights
                   + 3 * gc * w_len)       # line / y / normalized temporaries
        if est <= vmem_budget_bytes:
            fits.append(g)
    if not fits:
        return n_pos
    multi_step = [g for g in fits if batch * (n_pos // g) >= 2]
    return max(multi_step) if multi_step else max(fits)


def _time_att_kernel(x_ref, w_ref, b_ref, mask_ref, gamma_ref, beta_ref, o_ref):
    # x_ref:    (1, G*C, W)   rows = (position, channel), lanes = W.
    # w_ref:    (3*G*C, G*C)  block-diag [Wq*inv_kd ; Wk ; Wv*w_sum].
    # b_ref:    (3*G*C, 1)    matching bias column.
    # mask_ref: (G*C, G*C)    0 on diagonal CxC blocks, -1e30 elsewhere.
    # gamma/beta: (1, W)      LayerNorm affine parameters.
    # o_ref:    (1, G*C, W)
    xt = x_ref[0]                                   # (G*C, W) f32, residual input
    gc = mask_ref.shape[0]

    # One fused projection matmul (contraction depth G*C, full MXU depth).
    qkv = jnp.dot(w_ref[...], xt,
                  preferred_element_type=jnp.float32) + b_ref[...]   # (3*G*C, W)
    q = qkv[0 * gc:1 * gc, :]                       # 1/sqrt(C/num_head) folded
    k = qkv[1 * gc:2 * gc, :]
    v = qkv[2 * gc:3 * gc, :]                       # sum(out_w) folded

    # Batched block-diagonal scores: one matmul contracting over W, then mask.
    s = lax.dot_general(q, k, (((1,), (1,)), ((), ())),
                        preferred_element_type=jnp.float32)           # (G*C, G*C)
    s = s + mask_ref[...]
    s = s - jnp.max(s, axis=-1, keepdims=True)
    e = jnp.exp(s)
    a = e / jnp.sum(e, axis=-1, keepdims=True)      # exact divide (review note)

    # Batched A @ V: one (G*C, G*C) @ (G*C, W) matmul, 128-deep contraction.
    line = jnp.dot(a, v, preferred_element_type=jnp.float32)          # (G*C, W)

    # Residual + LayerNorm over W.  (out_b is uniform along W and is removed
    # exactly by the mean subtraction, so it was dropped in the wrapper.)
    y = xt + line
    mean = jnp.mean(y, axis=-1, keepdims=True)
    var = jnp.mean(jnp.square(y - mean), axis=-1, keepdims=True)
    o_ref[0] = (y - mean) * lax.rsqrt(var + 1e-5) * gamma_ref[...] + beta_ref[...]


def time_att_forward(x, params, num_head):
    """x: (B, N, Input_len, dim_input)  ->  (B, dim_input, N, Input_len)."""
    B, N, W, C = x.shape
    G = _pick_group(N, W, C, B)
    GC = G * C

    # Fold scalars into the weights (exact math, no approximation).
    inv_kd = 1.0 / jnp.sqrt(jnp.float32(C) / jnp.float32(num_head))
    w_sum = jnp.sum(params["out_w"]).astype(jnp.float32)
    wq = params["wq"].astype(jnp.float32) * inv_kd
    bq = params["bq"].astype(jnp.float32) * inv_kd
    wk = params["wk"].astype(jnp.float32)
    bk = params["bk"].astype(jnp.float32)
    wv = params["wv"].astype(jnp.float32) * w_sum
    bv = params["bv"].astype(jnp.float32) * w_sum

    # Block-diagonal fused QKV projection weights (built once, grid-constant).
    eye_g = jnp.eye(G, dtype=jnp.float32)
    w_stack = jnp.concatenate(
        [jnp.kron(eye_g, wq), jnp.kron(eye_g, wk), jnp.kron(eye_g, wv)], axis=0)
    b_stack = jnp.concatenate(
        [jnp.tile(bq, G), jnp.tile(bk, G), jnp.tile(bv, G)]).reshape(3 * GC, 1)

    # Additive mask selecting the diagonal CxC blocks of the big score matrix.
    blk = jnp.arange(GC, dtype=jnp.int32) // C
    mask = jnp.where(blk[:, None] == blk[None, :], 0.0, -1e30).astype(jnp.float32)

    gamma = params["ln_w"].astype(jnp.float32).reshape(1, W)
    beta = params["ln_b"].astype(jnp.float32).reshape(1, W)

    # Cheap wrapper permute (~16 KB): (B, N, W, C) -> (B, N*C, W).
    xt = jnp.transpose(x.astype(jnp.float32), (0, 1, 3, 2)).reshape(B, N * C, W)

    grid = (B, N // G)
    out = pl.pallas_call(
        _time_att_kernel,
        out_shape=jax.ShapeDtypeStruct((B, N * C, W), jnp.float32),
        grid=grid,
        in_specs=[
            pl.BlockSpec((1, GC, W), lambda b, j: (b, j, 0)),       # x (pos-major)
            pl.BlockSpec((3 * GC, GC), lambda b, j: (0, 0)),        # block-diag W
            pl.BlockSpec((3 * GC, 1), lambda b, j: (0, 0)),         # bias
            pl.BlockSpec((GC, GC), lambda b, j: (0, 0)),            # softmax mask
            pl.BlockSpec((1, W), lambda b, j: (0, 0)),              # gamma
            pl.BlockSpec((1, W), lambda b, j: (0, 0)),              # beta
        ],
        out_specs=pl.BlockSpec((1, GC, W), lambda b, j: (b, j, 0)),
        compiler_params=pltpu.CompilerParams(
            dimension_semantics=("parallel", "parallel")),
    )(xt, w_stack, b_stack, mask, gamma, beta)

    # Cheap wrapper permute (~16 KB) to the PyTorch return layout (B, C, N, W).
    return jnp.transpose(out.reshape(B, N, C, W), (0, 2, 1, 3))


def time_att_reference(x, params, num_head):
    """Pure-JAX reference matching the PyTorch forward (dropout = identity)."""
    B, N, W, C = x.shape
    xp = jnp.transpose(x, (0, 3, 1, 2)).astype(jnp.float32)       # (B, C, N, W)

    def conv1x1(w, b):
        return jnp.einsum("oc,bcnw->bonw", w, xp) + b[None, :, None, None]

    q = jnp.transpose(conv1x1(params["wq"], params["bq"]), (0, 2, 1, 3))  # (B,N,C,W)
    k = jnp.transpose(conv1x1(params["wk"], params["bk"]), (0, 2, 3, 1))  # (B,N,W,C)
    v = jnp.transpose(conv1x1(params["wv"], params["bv"]), (0, 2, 1, 3))  # (B,N,C,W)
    kd = jnp.sqrt(jnp.float32(C) / num_head)
    s = jnp.einsum("bncw,bnwd->bncd", q, k) / kd
    a = jax.nn.softmax(s, axis=-1)
    line = jnp.einsum("bncd,bndw->bncw", a, v)                    # (B, N, C, W)
    heads = jnp.stack([line] * num_head, axis=-1)                 # identical heads
    r = jnp.einsum("bncwh,h->bncw", heads, params["out_w"][0]) + params["out_b"][0]
    y = xp + jnp.transpose(r, (0, 2, 1, 3))
    mean = jnp.mean(y, -1, keepdims=True)
    var = jnp.mean((y - mean) ** 2, -1, keepdims=True)
    yn = (y - mean) / jnp.sqrt(var + 1e-5)
    return yn * params["ln_w"] + params["ln_b"]


if __name__ == "__main__":
    # Module hyperparameters (small, consistent with Time_att's forward).
    B, N = 2, 16
    Input_len = 16      # W  (LayerNorm axis)
    dim_input = 8       # C  (conv channels)
    num_head = 4

    key = jax.random.PRNGKey(0)
    ks = jax.random.split(key, 11)
    scale = 0.1
    params = {
        "wq": scale * jax.random.normal(ks[0], (dim_input, dim_input), jnp.float32),
        "bq": scale * jax.random.normal(ks[1], (dim_input,), jnp.float32),
        "wk": scale * jax.random.normal(ks[2], (dim_input, dim_input), jnp.float32),
        "bk": scale * jax.random.normal(ks[3], (dim_input,), jnp.float32),
        "wv": scale * jax.random.normal(ks[4], (dim_input, dim_input), jnp.float32),
        "bv": scale * jax.random.normal(ks[5], (dim_input,), jnp.float32),
        "out_w": scale * jax.random.normal(ks[6], (1, num_head), jnp.float32),
        "out_b": scale * jax.random.normal(ks[7], (1,), jnp.float32),
        "ln_w": 1.0 + 0.1 * jax.random.normal(ks[8], (Input_len,), jnp.float32),
        "ln_b": 0.05 * jax.random.normal(ks[9], (Input_len,), jnp.float32),
    }

    x = jax.random.normal(ks[10], (B, N, Input_len, dim_input), jnp.float32)

    out = time_att_forward(x, params, num_head)
    out = jax.block_until_ready(out)

    ref = time_att_reference(x, params, num_head)
    assert out.shape == (B, dim_input, N, Input_len), out.shape
    assert jnp.allclose(out, ref, atol=2e-3, rtol=2e-3), (
        float(jnp.max(jnp.abs(out - ref))))

    print("KERNEL_OK")
</pallas_src>

<mosaic_0001>
module attributes {stable_mosaic.version = 11 : i64} {
  func.func @_time_att_kernel(%arg0: i32, %arg1: i32, %arg2: memref<1x128x16xf32, #tpu.memory_space<vmem>>, %arg3: memref<384x128xf32, #tpu.memory_space<vmem>>, %arg4: memref<384x1xf32, #tpu.memory_space<vmem>>, %arg5: memref<128x128xf32, #tpu.memory_space<vmem>>, %arg6: memref<1x16xf32, #tpu.memory_space<vmem>>, %arg7: memref<1x16xf32, #tpu.memory_space<vmem>>, %arg8: memref<1x128x16xf32, #tpu.memory_space<vmem>>) attributes {dimension_semantics = [#tpu.dimension_semantics<parallel>, #tpu.dimension_semantics<parallel>], iteration_bounds = array<i64: 2, 1>, scalar_prefetch = 0 : i64, scratch_operands = 0 : i64, tpu.core_type = #tpu.core_type<tc>, window_params = [{transform_indices = @transform_0, window_bounds = array<i64: 1, 128, 16>}, {pipeline_mode = #tpu.pipeline_mode<synchronous>, transform_indices = @transform_1, window_bounds = array<i64: 384, 128>}, {pipeline_mode = #tpu.pipeline_mode<synchronous>, transform_indices = @transform_2, window_bounds = array<i64: 384, 1>}, {pipeline_mode = #tpu.pipeline_mode<synchronous>, transform_indices = @transform_3, window_bounds = array<i64: 128, 128>}, {pipeline_mode = #tpu.pipeline_mode<synchronous>, transform_indices = @transform_4, window_bounds = array<i64: 1, 16>}, {pipeline_mode = #tpu.pipeline_mode<synchronous>, transform_indices = @transform_5, window_bounds = array<i64: 1, 16>}, {transform_indices = @transform_6, window_bounds = array<i64: 1, 128, 16>}]} {
    %c0 = arith.constant 0 : index
    %c0_0 = arith.constant 0 : index
    %c0_1 = arith.constant 0 : index
    %0 = vector.load %arg2[%c0, %c0_0, %c0_1] : memref<1x128x16xf32, #tpu.memory_space<vmem>>, vector<1x128x16xf32>
    %1 = vector.shape_cast %0 : vector<1x128x16xf32> to vector<128x16xf32>
    %c0_2 = arith.constant 0 : index
    %c0_3 = arith.constant 0 : index
    %2 = vector.load %arg3[%c0_2, %c0_3] : memref<384x128xf32, #tpu.memory_space<vmem>>, vector<384x128xf32>
    %cst = arith.constant dense<0.000000e+00> : vector<384x16xf32>
    %3 = tpu.matmul %2, %1, %cst {dimension_numbers = #tpu.dot_dimension_numbers<[1], [0], [0], [1], [0, 0, 1, 1], [], []>} : vector<384x128xf32>, vector<128x16xf32>, vector<384x16xf32> -> vector<384x16xf32>
    %c0_4 = arith.constant 0 : index
    %c0_5 = arith.constant 0 : index
    %4 = vector.load %arg4[%c0_4, %c0_5] : memref<384x1xf32, #tpu.memory_space<vmem>>, vector<384x1xf32>
    %5 = vector.broadcast %4 : vector<384x1xf32> to vector<384x16xf32>
    %6 = arith.addf %3, %5 : vector<384x16xf32>
    %7 = vector.extract_strided_slice %6 {offsets = [0, 0], sizes = [128, 16], strides = [1, 1]} : vector<384x16xf32> to vector<128x16xf32>
    %8 = vector.extract_strided_slice %6 {offsets = [128, 0], sizes = [128, 16], strides = [1, 1]} : vector<384x16xf32> to vector<128x16xf32>
    %9 = vector.extract_strided_slice %6 {offsets = [256, 0], sizes = [128, 16], strides = [1, 1]} : vector<384x16xf32> to vector<128x16xf32>
    %cst_6 = arith.constant dense<0.000000e+00> : vector<128x128xf32>
    %10 = tpu.matmul %7, %8, %cst_6 {dimension_numbers = #tpu.dot_dimension_numbers<[1], [1], [0], [0], [0, 0, 1, 0], [], []>} : vector<128x16xf32>, vector<128x16xf32>, vector<128x128xf32> -> vector<128x128xf32>
    %c0_7 = arith.constant 0 : index
    %c0_8 = arith.constant 0 : index
    %11 = vector.load %arg5[%c0_7, %c0_8] : memref<128x128xf32, #tpu.memory_space<vmem>>, vector<128x128xf32>
    %12 = arith.addf %10, %11 : vector<128x128xf32>
    %cst_9 = arith.constant dense<0xFF800000> : vector<128xf32>
    %13 = vector.multi_reduction <maximumf>, %12, %cst_9 [1] : vector<128x128xf32> to vector<128xf32>
    %14 = vector.shape_cast %13 : vector<128xf32> to vector<128x1xf32>
    %15 = vector.broadcast %14 : vector<128x1xf32> to vector<128x128xf32>
    %16 = arith.subf %12, %15 : vector<128x128xf32>
    %17 = math.exp %16 : vector<128x128xf32>
    %cst_10 = arith.constant dense<0.000000e+00> : vector<128xf32>
    %18 = vector.multi_reduction <add>, %17, %cst_10 [1] : vector<128x128xf32> to vector<128xf32>
    %19 = vector.shape_cast %18 : vector<128xf32> to vector<128x1xf32>
    %20 = vector.broadcast %19 : vector<128x1xf32> to vector<128x128xf32>
    %21 = arith.divf %17, %20 : vector<128x128xf32>
    %cst_11 = arith.constant dense<0.000000e+00> : vector<128x16xf32>
    %22 = tpu.matmul %21, %9, %cst_11 {dimension_numbers = #tpu.dot_dimension_numbers<[1], [0], [0], [1], [0, 0, 1, 1], [], []>} : vector<128x128xf32>, vector<128x16xf32>, vector<128x16xf32> -> vector<128x16xf32>
    %23 = arith.addf %1, %22 : vector<128x16xf32>
    %cst_12 = arith.constant dense<0.000000e+00> : vector<128xf32>
    %24 = vector.multi_reduction <add>, %23, %cst_12 [1] : vector<128x16xf32> to vector<128xf32>
    %25 = vector.shape_cast %24 : vector<128xf32> to vector<128x1xf32>
    %cst_13 = arith.constant 1.600000e+01 : f32
    %26 = vector.broadcast %cst_13 : f32 to vector<128x1xf32>
    %27 = arith.divf %25, %26 : vector<128x1xf32>
    %28 = vector.broadcast %27 : vector<128x1xf32> to vector<128x16xf32>
    %29 = arith.subf %23, %28 : vector<128x16xf32>
    %30 = arith.mulf %29, %29 : vector<128x16xf32>
    %cst_14 = arith.constant dense<0.000000e+00> : vector<128xf32>
    %31 = vector.multi_reduction <add>, %30, %cst_14 [1] : vector<128x16xf32> to vector<128xf32>
    %32 = vector.shape_cast %31 : vector<128xf32> to vector<128x1xf32>
    %cst_15 = arith.constant 1.600000e+01 : f32
    %33 = vector.broadcast %cst_15 : f32 to vector<128x1xf32>
    %34 = arith.divf %32, %33 : vector<128x1xf32>
    %35 = vector.broadcast %27 : vector<128x1xf32> to vector<128x16xf32>
    %36 = arith.subf %23, %35 : vector<128x16xf32>
    %cst_16 = arith.constant 9.99999974E-6 : f32
    %37 = vector.broadcast %cst_16 : f32 to vector<128x1xf32>
    %38 = arith.addf %34, %37 : vector<128x1xf32>
    %39 = math.rsqrt %38 : vector<128x1xf32>
    %40 = vector.broadcast %39 : vector<128x1xf32> to vector<128x16xf32>
    %41 = arith.mulf %36, %40 : vector<128x16xf32>
    %c0_17 = arith.constant 0 : index
    %c0_18 = arith.constant 0 : index
    %42 = vector.load %arg6[%c0_17, %c0_18] : memref<1x16xf32, #tpu.memory_space<vmem>>, vector<1x16xf32>
    %43 = vector.broadcast %42 : vector<1x16xf32> to vector<128x16xf32>
    %44 = arith.mulf %41, %43 : vector<128x16xf32>
    %c0_19 = arith.constant 0 : index
    %c0_20 = arith.constant 0 : index
    %45 = vector.load %arg7[%c0_19, %c0_20] : memref<1x16xf32, #tpu.memory_space<vmem>>, vector<1x16xf32>
    %46 = vector.broadcast %45 : vector<1x16xf32> to vector<128x16xf32>
    %47 = arith.addf %44, %46 : vector<128x16xf32>
    %c0_21 = arith.constant 0 : index
    %c0_22 = arith.constant 0 : index
    %c0_23 = arith.constant 0 : index
    %48 = vector.load %arg8[%c0_21, %c0_22, %c0_23] : memref<1x128x16xf32, #tpu.memory_space<vmem>>, vector<1x128x16xf32>
    %49 = vector.shape_cast %48 : vector<1x128x16xf32> to vector<128x16xf32>
    %50 = vector.shape_cast %47 : vector<128x16xf32> to vector<1x128x16xf32>
    tpu.vector_store %arg8[%c0_21, %c0_22, %c0_23], %50 {strides = array<i32>} : memref<1x128x16xf32, #tpu.memory_space<vmem>>, vector<1x128x16xf32>,
    return
  }
  func.func @transform_0(%arg0: i32, %arg1: i32) -> (i32, i32, i32) {
    %c0_i32 = arith.constant 0 : i32
    %c0_i32_0 = arith.constant 0 : i32
    return %arg0, %arg1, %c0_i32 : i32, i32, i32
  }
  func.func @transform_1(%arg0: i32, %arg1: i32) -> (i32, i32) {
    %c0_i32 = arith.constant 0 : i32
    %c0_i32_0 = arith.constant 0 : i32
    %c0_i32_1 = arith.constant 0 : i32
    return %c0_i32, %c0_i32_0 : i32, i32
  }
  func.func @transform_2(%arg0: i32, %arg1: i32) -> (i32, i32) {
    %c0_i32 = arith.constant 0 : i32
    %c0_i32_0 = arith.constant 0 : i32
    %c0_i32_1 = arith.constant 0 : i32
    return %c0_i32, %c0_i32_0 : i32, i32
  }
  func.func @transform_3(%arg0: i32, %arg1: i32) -> (i32, i32) {
    %c0_i32 = arith.constant 0 : i32
    %c0_i32_0 = arith.constant 0 : i32
    %c0_i32_1 = arith.constant 0 : i32
    return %c0_i32, %c0_i32_0 : i32, i32
  }
  func.func @transform_4(%arg0: i32, %arg1: i32) -> (i32, i32) {
    %c0_i32 = arith.constant 0 : i32
    %c0_i32_0 = arith.constant 0 : i32
    %c0_i32_1 = arith.constant 0 : i32
    return %c0_i32, %c0_i32_0 : i32, i32
  }
  func.func @transform_5(%arg0: i32, %arg1: i32) -> (i32, i32) {
    %c0_i32 = arith.constant 0 : i32
    %c0_i32_0 = arith.constant 0 : i32
    %c0_i32_1 = arith.constant 0 : i32
    return %c0_i32, %c0_i32_0 : i32, i32
  }
  func.func @transform_6(%arg0: i32, %arg1: i32) -> (i32, i32, i32) {
    %c0_i32 = arith.constant 0 : i32
    %c0_i32_0 = arith.constant 0 : i32
    return %arg0, %arg1, %c0_i32 : i32, i32, i32
  }
}

</mosaic_0001>

<llo_original>
// kernel: tpu_custom_call.1
$region0: #{tpu_custom_call.1}
  #allocation0 [shape = 'u32[]', space=smem, size = 0x4, offset = 0x4, fixed_abs, tag = 'smem constant byte address 0x4 - core index']
  #allocation1 [shape = 'u32[144,128]{1,0:T(1,128)}', space=vmem, size = 0x12000, scoped, tag = 'internal scratch']
  %s0 = inlined_call_operand.vmem [shape: f32[2,128,16], index: 0, kind: input, shape index: {}]
  %s1 = inlined_call_operand.vmem [shape: f32[384,128], index: 1, kind: input, shape index: {}]
  %s2 = inlined_call_operand.vmem [shape: f32[384,1], index: 2, kind: input, shape index: {}]
  %s3 = inlined_call_operand.vmem [shape: f32[128,128], index: 3, kind: input, shape index: {}]
  %s4 = inlined_call_operand.vmem [shape: f32[1,16], index: 4, kind: input, shape index: {}]
  %s5 = inlined_call_operand.vmem [shape: f32[1,16], index: 5, kind: input, shape index: {}]
  %s6 = inlined_call_operand.vmem [shape: f32[2,128,16], index: 6, kind: output, shape index: {}]
  %s7 = sld [smem:[#allocation0]]
  $region57: #{tpu_custom_call.1} parent=0
    _
  %s9 = ssub.s32 1, %s7
  %s10 = scalar_select 0, %s9, %s7
  loop: start=0, step=1, limit=4
  $region2: #{tpu_custom_call.1} parent=0 // loop_pre_header
    _
  $region3: #{tpu_custom_call.1} parent=0 // loop_header
    %s12 = sphi 0, %s16
    %p13 = scmp.ge.s32.totalorder %s12, 4
    %s19 = sphi 0, %s31
    %s20 = sphi 0, %s27
    %s21 = sphi 0, %s19
    %s22 = sphi 0, %s20
    %s23 = sphi 0, %s21
    %s24 = sphi 0, %s22
    %s36 = sphi 0, %s38
    %s39 = sphi 0, %s36
    %s40 = sphi 0, %s39
    %s56 = sphi 0, %s40
    %s60 = sphi 0, %s60
    %s62 = sphi 0, %s60
    %s63 = sphi 0, %s62
    %s77 = sphi 0, %s63
    %s81 = sphi 0, %s81
    %s83 = sphi 0, %s81
    %s84 = sphi 0, %s83
    %s98 = sphi 0, %s84
    %s102 = sphi 0, %s102
    %s104 = sphi 0, %s102
    %s105 = sphi 0, %s104
    %s119 = sphi 0, %s105
    %s123 = sphi 0, %s123
    %s125 = sphi 0, %s123
    %s126 = sphi 0, %s125
    %s140 = sphi 0, %s126
    %s144 = sphi 0, %s144
    %s146 = sphi 0, %s144
    %s147 = sphi 0, %s146
    %s161 = sphi 0, %s147
    %s169 = sphi 0, %s171
    %s172 = sphi 0, %s169
    %s173 = sphi 0, %s172
    %s189 = sphi 0, %s173
  $region4: #{tpu_custom_call.1} parent=0 // loop_header_branch
    %15 = sbr.rel (%p13) target = $region8
  $region5: #{tpu_custom_call.1} parent=0 // loop_body
    %s17 = ssub.s32 %s12, 1
    %s18 = ssub.s32 %s12, 2
    %s25 = sadd.s32 1, %s20
    %p26 = scmp.ge.s32.totalorder %s25, 1
    %s27 = scalar_select %p26, 0, %s25
    %s28 = sadd.s32 1, %s19
    %s29 = scalar_select %p26, %s28, %s19
    %p30 = scmp.ge.s32.totalorder %s29, 2
    %s31 = scalar_select %p30, 0, %s29
    %s32 = ssub.s32 %s19, %s31
    %s33 = ssub.s32 %s20, %s27
    %s34 = sor.u32 %s32, %s33
    %p35 = scmp.eq.s32.totalorder %s34, 0
    %s37 = sadd.s32 %s36, 1
    %s38 = scalar_select %p35, %s36, %s37
    %p41 = pneg %p35
    %p42 = scmp.eq.s32.totalorder %s12, 1
    %p43 = por %p41, %p42
    %p44 = scmp.ne.s32.totalorder %s36, %s39
    %p45 = scmp.eq.s32.totalorder %s12, 0
    %p46 = por %p44, %p45
    %p47 = scmp.ne.s32.totalorder %s36, %s39
    %p48 = scmp.eq.s32.totalorder %s17, 1
    %p49 = por %p47, %p48
    %p50 = scmp.ne.s32.totalorder %s39, %s40
    %p51 = scmp.eq.s32.totalorder %s17, 0
    %p52 = por %p50, %p51
    %p53 = scmp.ne.s32.totalorder %s39, %s40
    %p54 = scmp.eq.s32.totalorder %s18, 1
    %p55 = por %p53, %p54
    %p57 = scmp.ne.s32.totalorder %s40, %s56
    %p58 = scmp.eq.s32.totalorder %s18, 0
    %p59 = por %p57, %p58
    %s61 = sadd.s32 %s60, 1
    %p64 = scmp.eq.s32.totalorder %s12, 1
    %p65 = scmp.ne.s32.totalorder %s60, %s62
    %p66 = scmp.eq.s32.totalorder %s12, 0
    %p67 = por %p65, %p66
    %p68 = scmp.ne.s32.totalorder %s60, %s62
    %p69 = scmp.eq.s32.totalorder %s17, 1
    %p70 = por %p68, %p69
    %p71 = scmp.ne.s32.totalorder %s62, %s63
    %p72 = scmp.eq.s32.totalorder %s17, 0
    %p73 = por %p71, %p72
    %p74 = scmp.ne.s32.totalorder %s62, %s63
    %p75 = scmp.eq.s32.totalorder %s18, 1
    %p76 = por %p74, %p75
    %p78 = scmp.ne.s32.totalorder %s63, %s77
    %p79 = scmp.eq.s32.totalorder %s18, 0
    %p80 = por %p78, %p79
    %s82 = sadd.s32 %s81, 1
    %p85 = scmp.eq.s32.totalorder %s12, 1
    %p86 = scmp.ne.s32.totalorder %s81, %s83
    %p87 = scmp.eq.s32.totalorder %s12, 0
    %p88 = por %p86, %p87
    %p89 = scmp.ne.s32.totalorder %s81, %s83
    %p90 = scmp.eq.s32.totalorder %s17, 1
    %p91 = por %p89, %p90
    %p92 = scmp.ne.s32.totalorder %s83, %s84
    %p93 = scmp.eq.s32.totalorder %s17, 0
    %p94 = por %p92, %p93
    %p95 = scmp.ne.s32.totalorder %s83, %s84
    %p96 = scmp.eq.s32.totalorder %s18, 1
    %p97 = por %p95, %p96
    %p99 = scmp.ne.s32.totalorder %s84, %s98
    %p100 = scmp.eq.s32.totalorder %s18, 0
    %p101 = por %p99, %p100
    %s103 = sadd.s32 %s102, 1
    %p106 = scmp.eq.s32.totalorder %s12, 1
    %p107 = scmp.ne.s32.totalorder %s102, %s104
    %p108 = scmp.eq.s32.totalorder %s12, 0
    %p109 = por %p107, %p108
    %p110 = scmp.ne.s32.totalorder %s102, %s104
    %p111 = scmp.eq.s32.totalorder %s17, 1
    %p112 = por %p110, %p111
    %p113 = scmp.ne.s32.totalorder %s104, %s105
    %p114 = scmp.eq.s32.totalorder %s17, 0
    %p115 = por %p113, %p114
    %p116 = scmp.ne.s32.totalorder %s104, %s105
    %p117 = scmp.eq.s32.totalorder %s18, 1
    %p118 = por %p116, %p117
    %p120 = scmp.ne.s32.totalorder %s105, %s119
    %p121 = scmp.eq.s32.totalorder %s18, 0
    %p122 = por %p120, %p121
    %s124 = sadd.s32 %s123, 1
    %p127 = scmp.eq.s32.totalorder %s12, 1
    %p128 = scmp.ne.s32.totalorder %s123, %s125
    %p129 = scmp.eq.s32.totalorder %s12, 0
    %p130 = por %p128, %p129
    %p131 = scmp.ne.s32.totalorder %s123, %s125
    %p132 = scmp.eq.s32.totalorder %s17, 1
    %p133 = por %p131, %p132
    %p134 = scmp.ne.s32.totalorder %s125, %s126
    %p135 = scmp.eq.s32.totalorder %s17, 0
    %p136 = por %p134, %p135
    %p137 = scmp.ne.s32.totalorder %s125, %s126
    %p138 = scmp.eq.s32.totalorder %s18, 1
    %p139 = por %p137, %p138
    %p141 = scmp.ne.s32.totalorder %s126, %s140
    %p142 = scmp.eq.s32.totalorder %s18, 0
    %p143 = por %p141, %p142
    %s145 = sadd.s32 %s144, 1
    %p148 = scmp.eq.s32.totalorder %s12, 1
    %p149 = scmp.ne.s32.totalorder %s144, %s146
    %p150 = scmp.eq.s32.totalorder %s12, 0
    %p151 = por %p149, %p150
    %p152 = scmp.ne.s32.totalorder %s144, %s146
    %p153 = scmp.eq.s32.totalorder %s17, 1
    %p154 = por %p152, %p153
    %p155 = scmp.ne.s32.totalorder %s146, %s147
    %p156 = scmp.eq.s32.totalorder %s17, 0
    %p157 = por %p155, %p156
    %p158 = scmp.ne.s32.totalorder %s146, %s147
    %p159 = scmp.eq.s32.totalorder %s18, 1
    %p160 = por %p158, %p159
    %p162 = scmp.ne.s32.totalorder %s147, %s161
    %p163 = scmp.eq.s32.totalorder %s18, 0
    %p164 = por %p162, %p163
    %s165 = ssub.s32 %s19, %s31
    %s166 = ssub.s32 %s20, %s27
    %s167 = sor.u32 %s165, %s166
    %p168 = scmp.eq.s32.totalorder %s167, 0
    %s170 = sadd.s32 %s169, 1
    %s171 = scalar_select %p168, %s169, %s170
    %p174 = pneg %p168
    %p175 = scmp.eq.s32.totalorder %s12, 1
    %p176 = por %p174, %p175
    %p177 = scmp.ne.s32.totalorder %s169, %s172
    %p178 = scmp.eq.s32.totalorder %s12, 0
    %p179 = por %p177, %p178
    %p180 = scmp.ne.s32.totalorder %s169, %s172
    %p181 = scmp.eq.s32.totalorder %s17, 1
    %p182 = por %p180, %p181
    %p183 = scmp.ne.s32.totalorder %s172, %s173
    %p184 = scmp.eq.s32.totalorder %s17, 0
    %p185 = por %p183, %p184
    %p186 = scmp.ne.s32.totalorder %s172, %s173
    %p187 = scmp.eq.s32.totalorder %s18, 1
    %p188 = por %p186, %p187
    %p190 = scmp.ne.s32.totalorder %s173, %s189
    %p191 = scmp.eq.s32.totalorder %s18, 0
    %p192 = por %p190, %p191
    %p193 = scmp.le.s32.totalorder 1, %s12
    %p194 = scmp.lt.s32.totalorder %s12, 3
    %p195 = pnand %p193, %p194
    %p196 = pneg %p195
    // Predicated region
    $region9: #{tpu_custom_call.1} parent=5 // pred_check
      _
    $region10: #{tpu_custom_call.1} parent=5 // pred_check_branch
      %198 = sbr.rel (%p195) target = $region12
    $region11: #{tpu_custom_call.1} parent=5 // pred_region
      %s199 = ssub.s32 %s12, 1
      // Predicated region
      $region13: #{tpu_custom_call.1} parent=11 // pred_check
        %p200 = pneg %p73
      $region14: #{tpu_custom_call.1} parent=11 // pred_check_branch
        %202 = sbr.rel (%p200) target = $region16
      $region15: #{tpu_custom_call.1} parent=11 // pred_region
        _
      $region16: #{tpu_custom_call.1} parent=11 // pred_fallthru
        _
      // Predicated region
      $region17: #{tpu_custom_call.1} parent=11 // pred_check
        %p203 = pneg %p94
      $region18: #{tpu_custom_call.1} parent=11 // pred_check_branch
        %205 = sbr.rel (%p203) target = $region20
      $region19: #{tpu_custom_call.1} parent=11 // pred_region
        _
      $region20: #{tpu_custom_call.1} parent=11 // pred_fallthru
        _
      // Predicated region
      $region21: #{tpu_custom_call.1} parent=11 // pred_check
        %p206 = pneg %p115
      $region22: #{tpu_custom_call.1} parent=11 // pred_check_branch
        %208 = sbr.rel (%p206) target = $region24
      $region23: #{tpu_custom_call.1} parent=11 // pred_region
        _
      $region24: #{tpu_custom_call.1} parent=11 // pred_fallthru
        _
      // Predicated region
      $region25: #{tpu_custom_call.1} parent=11 // pred_check
        %p209 = pneg %p136
      $region26: #{tpu_custom_call.1} parent=11 // pred_check_branch
        %211 = sbr.rel (%p209) target = $region28
      $region27: #{tpu_custom_call.1} parent=11 // pred_region
        _
      $region28: #{tpu_custom_call.1} parent=11 // pred_fallthru
        _
      // Predicated region
      $region29: #{tpu_custom_call.1} parent=11 // pred_check
        %p212 = pneg %p157
      $region30: #{tpu_custom_call.1} parent=11 // pred_check_branch
        %214 = sbr.rel (%p212) target = $region32
      $region31: #{tpu_custom_call.1} parent=11 // pred_region
        _
      $region32: #{tpu_custom_call.1} parent=11 // pred_fallthru
        _
    $region12: #{tpu_custom_call.1} parent=5 // pred_fallthru
      _
    %p215 = scmp.lt.s32.totalorder %s12, 2
    // Predicated region
    $region33: #{tpu_custom_call.1} parent=5 // pred_check
      %p216 = pneg %p215
    $region34: #{tpu_custom_call.1} parent=5 // pred_check_branch
      %218 = sbr.rel (%p216) target = $region36
    $region35: #{tpu_custom_call.1} parent=5 // pred_region
      // Predicated region
      $region37: #{tpu_custom_call.1} parent=35 // pred_check
        %p219 = pneg %p46
      $region38: #{tpu_custom_call.1} parent=35 // pred_check_branch
        %221 = sbr.rel (%p219) target = $region40
      $region39: #{tpu_custom_call.1} parent=35 // pred_region
        %s222 = smul.u32 16, %s20
        %p223 = scmp.lt.s32.totalorder %s19, 1
        %s224 = scalar_select %p223, %s19, 1
        %p225 = scmp.lt.s32.totalorder %s222, 15
        %s226 = scalar_select %p225, %s222, 15
        %s227 = smul.addr %s224, 16
        %s228 = sadd.s32 %s226, %s227
        %s229 = smul.addr %s228, 8
        %s230 = scalar_lea.vmem %s0, %s229
        %s231 = smul.u32 16, %s20
      $region40: #{tpu_custom_call.1} parent=35 // pred_fallthru
        _
    $region36: #{tpu_custom_call.1} parent=5 // pred_fallthru
      _
    %p232 = scmp.le.s32.totalorder 1, %s12
    %p233 = scmp.lt.s32.totalorder %s12, 3
    %p234 = pnand %p232, %p233
    %p235 = pneg %p234
    // Predicated region
    $region41: #{tpu_custom_call.1} parent=5 // pred_check
      _
    $region42: #{tpu_custom_call.1} parent=5 // pred_check_branch
      %237 = sbr.rel (%p234) target = $region44
    $region43: #{tpu_custom_call.1} parent=5 // pred_region
      %s238 = ssub.s32 %s12, 1
      %s239 = smul.u32 16, %s22
      %p240 = scmp.lt.s32.totalorder %s21, 1
      %s241 = scalar_select %p240, %s21, 1
      %p242 = scmp.lt.s32.totalorder %s239, 15
      %s243 = scalar_select %p242, %s239, 15
      %s244 = smul.addr %s241, 16
      %s245 = sadd.s32 %s243, %s244
      %s246 = smul.addr %s245, 8
      %s247 = scalar_lea.vmem %s0, %s246
      %p248 = pneg %p52
      %p249 = pneg %p49
      %p250 = pneg %p73
      %p251 = pneg %p70
      %p252 = pneg %p94
      %p253 = pneg %p91
      %p254 = pneg %p115
      %p255 = pneg %p112
      %p256 = pneg %p136
      %p257 = pneg %p133
      %p258 = pneg %p157
      %p259 = pneg %p154
      %p260 = pneg %p185
      %p261 = pneg %p182
      %s262 = smul.u32 16, %s22
      %p263 = scmp.lt.s32.totalorder %s21, 1
      %s264 = scalar_select %p263, %s21, 1
      %p265 = scmp.lt.s32.totalorder %s262, 15
      %s266 = scalar_select %p265, %s262, 15
      %s267 = smul.addr %s264, 16
      %s268 = sadd.s32 %s266, %s267
      %s269 = smul.addr %s268, 8
      %s270 = scalar_lea.vmem %s6, %s269
      %s271 = smul.u32 16, %s22
      %p272 = scmp.lt.s32.totalorder %s21, 1
      %s273 = scalar_select %p272, %s21, 1
      %p274 = scmp.lt.s32.totalorder %s271, 15
      %s275 = scalar_select %p274, %s271, 15
      %s276 = smul.addr %s273, 16
      %s277 = sadd.s32 %s275, %s276
      %s278 = smul.addr %s277, 8
      %s279 = scalar_lea.vmem %s0, %s278
      %s280 = smul.u32 16, %s22
      %s281 = smul.u32 16, %s22
      %p282 = scmp.lt.s32.totalorder %s21, 1
      %s283 = scalar_select %p282, %s21, 1
      %p284 = scmp.lt.s32.totalorder %s281, 15
      %s285 = scalar_select %p284, %s281, 15
      %s286 = smul.addr %s283, 16
      %s287 = sadd.s32 %s285, %s286
      %s288 = smul.addr %s287, 8
      %s289 = scalar_lea.vmem %s6, %s288
      %s290 = smul.u32 16, %s22
      %v291 = vld [vmem:[%s279] sm:$0xff]
      %v292 = vld [vmem:[%s279 + $0x8] sm:$0xff]
      %v293 = vld [vmem:[%s279 + $0x10] sm:$0xff]
      %v294 = vld [vmem:[%s279 + $0x18] sm:$0xff]
      %v295 = vld [vmem:[%s279 + $0x20] sm:$0xff]
      %v296 = vld [vmem:[%s279 + $0x28] sm:$0xff]
      %v297 = vld [vmem:[%s279 + $0x30] sm:$0xff]
      %v298 = vld [vmem:[%s279 + $0x38] sm:$0xff]
      %v299 = vld [vmem:[%s279 + $0x40] sm:$0xff]
      %v300 = vld [vmem:[%s279 + $0x48] sm:$0xff]
      %v301 = vld [vmem:[%s279 + $0x50] sm:$0xff]
      %v302 = vld [vmem:[%s279 + $0x58] sm:$0xff]
      %v303 = vld [vmem:[%s279 + $0x60] sm:$0xff]
      %v304 = vld [vmem:[%s279 + $0x68] sm:$0xff]
      %v305 = vld [vmem:[%s279 + $0x70] sm:$0xff]
      %v306 = vld [vmem:[%s279 + $0x78] sm:$0xff]
      %v307 = vld [vmem:[%s1] sm:$0xff]
      %v308 = vld [vmem:[%s1 + $0x8] sm:$0xff]
      %v309 = vld [vmem:[%s1 + $0x10] sm:$0xff]
      %v310 = vld [vmem:[%s1 + $0x18] sm:$0xff]
      %v311 = vld [vmem:[%s1 + $0x20] sm:$0xff]
      %v312 = vld [vmem:[%s1 + $0x28] sm:$0xff]
      %v313 = vld [vmem:[%s1 + $0x30] sm:$0xff]
      %v314 = vld [vmem:[%s1 + $0x38] sm:$0xff]
      %v315 = vld [vmem:[%s1 + $0x40] sm:$0xff]
      %v316 = vld [vmem:[%s1 + $0x48] sm:$0xff]
      %v317 = vld [vmem:[%s1 + $0x50] sm:$0xff]
      %v318 = vld [vmem:[%s1 + $0x58] sm:$0xff]
      %v319 = vld [vmem:[%s1 + $0x60] sm:$0xff]
      %v320 = vld [vmem:[%s1 + $0x68] sm:$0xff]
      %v321 = vld [vmem:[%s1 + $0x70] sm:$0xff]
      %v322 = vld [vmem:[%s1 + $0x78] sm:$0xff]
      %v323 = vld [vmem:[%s1 + $0x80] sm:$0xff]
      %v324 = vld [vmem:[%s1 + $0x88] sm:$0xff]
      %v325 = vld [vmem:[%s1 + $0x90] sm:$0xff]
      %v326 = vld [vmem:[%s1 + $0x98] sm:$0xff]
      %v327 = vld [vmem:[%s1 + $0xa0] sm:$0xff]
      %v328 = vld [vmem:[%s1 + $0xa8] sm:$0xff]
      %v329 = vld [vmem:[%s1 + $0xb0] sm:$0xff]
      %v330 = vld [vmem:[%s1 + $0xb8] sm:$0xff]
      %v331 = vld [vmem:[%s1 + $0xc0] sm:$0xff]
      %v332 = vld [vmem:[%s1 + $0xc8] sm:$0xff]
      %v333 = vld [vmem:[%s1 + $0xd0] sm:$0xff]
      %v334 = vld [vmem:[%s1 + $0xd8] sm:$0xff]
      %v335 = vld [vmem:[%s1 + $0xe0] sm:$0xff]
      %v336 = vld [vmem:[%s1 + $0xe8] sm:$0xff]
      %v337 = vld [vmem:[%s1 + $0xf0] sm:$0xff]
      %v338 = vld [vmem:[%s1 + $0xf8] sm:$0xff]
      %v339 = vld [vmem:[%s1 + $0x100] sm:$0xff]
      %v340 = vld [vmem:[%s1 + $0x108] sm:$0xff]
      %v341 = vld [vmem:[%s1 + $0x110] sm:$0xff]
      %v342 = vld [vmem:[%s1 + $0x118] sm:$0xff]
      %v343 = vld [vmem:[%s1 + $0x120] sm:$0xff]
      %v344 = vld [vmem:[%s1 + $0x128] sm:$0xff]
      %v345 = vld [vmem:[%s1 + $0x130] sm:$0xff]
      %v346 = vld [vmem:[%s1 + $0x138] sm:$0xff]
      %v347 = vld [vmem:[%s1 + $0x140] sm:$0xff]
      %v348 = vld [vmem:[%s1 + $0x148] sm:$0xff]
      %v349 = vld [vmem:[%s1 + $0x150] sm:$0xff]
      %v350 = vld [vmem:[%s1 + $0x158] sm:$0xff]
      %v351 = vld [vmem:[%s1 + $0x160] sm:$0xff]
      %v352 = vld [vmem:[%s1 + $0x168] sm:$0xff]
      %v353 = vld [vmem:[%s1 + $0x170] sm:$0xff]
      %v354 = vld [vmem:[%s1 + $0x178] sm:$0xff]
      %v355 = vld [vmem:[%s2] sm:$0xff]
      %v356 = vld [vmem:[%s2 + $0x8] sm:$0xff]
      %v357 = vld [vmem:[%s2 + $0x10] sm:$0xff]
      %v358 = vld [vmem:[%s2 + $0x18] sm:$0xff]
      %v359 = vld [vmem:[%s2 + $0x20] sm:$0xff]
      %v360 = vld [vmem:[%s2 + $0x28] sm:$0xff]
      %v361 = vld [vmem:[%s2 + $0x30] sm:$0xff]
      %v362 = vld [vmem:[%s2 + $0x38] sm:$0xff]
      %v363 = vld [vmem:[%s2 + $0x40] sm:$0xff]
      %v364 = vld [vmem:[%s2 + $0x48] sm:$0xff]
      %v365 = vld [vmem:[%s2 + $0x50] sm:$0xff]
      %v366 = vld [vmem:[%s2 + $0x58] sm:$0xff]
      %v367 = vld [vmem:[%s2 + $0x60] sm:$0xff]
      %v368 = vld [vmem:[%s2 + $0x68] sm:$0xff]
      %v369 = vld [vmem:[%s2 + $0x70] sm:$0xff]
      %v370 = vld [vmem:[%s2 + $0x78] sm:$0xff]
      %v371 = vld [vmem:[%s2 + $0x80] sm:$0xff]
      %v372 = vld [vmem:[%s2 + $0x88] sm:$0xff]
      %v373 = vld [vmem:[%s2 + $0x90] sm:$0xff]
      %v374 = vld [vmem:[%s2 + $0x98] sm:$0xff]
      %v375 = vld [vmem:[%s2 + $0xa0] sm:$0xff]
      %v376 = vld [vmem:[%s2 + $0xa8] sm:$0xff]
      %v377 = vld [vmem:[%s2 + $0xb0] sm:$0xff]
      %v378 = vld [vmem:[%s2 + $0xb8] sm:$0xff]
      %v379 = vld [vmem:[%s2 + $0xc0] sm:$0xff]
      %v380 = vld [vmem:[%s2 + $0xc8] sm:$0xff]
      %v381 = vld [vmem:[%s2 + $0xd0] sm:$0xff]
      %v382 = vld [vmem:[%s2 + $0xd8] sm:$0xff]
      %v383 = vld [vmem:[%s2 + $0xe0] sm:$0xff]
      %v384 = vld [vmem:[%s2 + $0xe8] sm:$0xff]
      %v385 = vld [vmem:[%s2 + $0xf0] sm:$0xff]
      %v386 = vld [vmem:[%s2 + $0xf8] sm:$0xff]
      %v387 = vld [vmem:[%s2 + $0x100] sm:$0xff]
      %v388 = vld [vmem:[%s2 + $0x108] sm:$0xff]
      %v389 = vld [vmem:[%s2 + $0x110] sm:$0xff]
      %v390 = vld [vmem:[%s2 + $0x118] sm:$0xff]
      %v391 = vld [vmem:[%s2 + $0x120] sm:$0xff]
      %v392 = vld [vmem:[%s2 + $0x128] sm:$0xff]
      %v393 = vld [vmem:[%s2 + $0x130] sm:$0xff]
      %v394 = vld [vmem:[%s2 + $0x138] sm:$0xff]
      %v395 = vld [vmem:[%s2 + $0x140] sm:$0xff]
      %v396 = vld [vmem:[%s2 + $0x148] sm:$0xff]
      %v397 = vld [vmem:[%s2 + $0x150] sm:$0xff]
      %v398 = vld [vmem:[%s2 + $0x158] sm:$0xff]
      %v399 = vld [vmem:[%s2 + $0x160] sm:$0xff]
      %v400 = vld [vmem:[%s2 + $0x168] sm:$0xff]
      %v401 = vld [vmem:[%s2 + $0x170] sm:$0xff]
      %v402 = vld [vmem:[%s2 + $0x178] sm:$0xff]
      %404 = vset.pattern.permute.xlu0 0
      %405 = vperm.xlu0 %404, %v355
      %v406 = vpop.permute.xlu0 %405
      %409 = vset.pattern.permute.xlu0 0
      %410 = vperm.xlu0 %409, %v356
      %v411 = vpop.permute.xlu0 %410
      %414 = vset.pattern.permute.xlu0 0
      %415 = vperm.xlu0 %414, %v357
      %v416 = vpop.permute.xlu0 %415
      %419 = vset.pattern.permute.xlu0 0
      %420 = vperm.xlu0 %419, %v358
      %v421 = vpop.permute.xlu0 %420
      %424 = vset.pattern.permute.xlu0 0
      %425 = vperm.xlu0 %424, %v359
      %v426 = vpop.permute.xlu0 %425
      %429 = vset.pattern.permute.xlu0 0
      %430 = vperm.xlu0 %429, %v360
      %v431 = vpop.permute.xlu0 %430
      %434 = vset.pattern.permute.xlu0 0
      %435 = vperm.xlu0 %434, %v361
      %v436 = vpop.permute.xlu0 %435
      %439 = vset.pattern.permute.xlu0 0
      %440 = vperm.xlu0 %439, %v362
      %v441 = vpop.permute.xlu0 %440
      %444 = vset.pattern.permute.xlu0 0
      %445 = vperm.xlu0 %444, %v363
      %v446 = vpop.permute.xlu0 %445
      %449 = vset.pattern.permute.xlu0 0
      %450 = vperm.xlu0 %449, %v364
      %v451 = vpop.permute.xlu0 %450
      %454 = vset.pattern.permute.xlu0 0
      %455 = vperm.xlu0 %454, %v365
      %v456 = vpop.permute.xlu0 %455
      %459 = vset.pattern.permute.xlu0 0
      %460 = vperm.xlu0 %459, %v366
      %v461 = vpop.permute.xlu0 %460
      %464 = vset.pattern.permute.xlu0 0
      %465 = vperm.xlu0 %464, %v367
      %v466 = vpop.permute.xlu0 %465
      %469 = vset.pattern.permute.xlu0 0
      %470 = vperm.xlu0 %469, %v368
      %v471 = vpop.permute.xlu0 %470
      %474 = vset.pattern.permute.xlu0 0
      %475 = vperm.xlu0 %474, %v369
      %v476 = vpop.permute.xlu0 %475
      %479 = vset.pattern.permute.xlu0 0
      %480 = vperm.xlu0 %479, %v370
      %v481 = vpop.permute.xlu0 %480
      %484 = vset.pattern.permute.xlu0 0
      %485 = vperm.xlu0 %484, %v371
      %v486 = vpop.permute.xlu0 %485
      %489 = vset.pattern.permute.xlu0 0
      %490 = vperm.xlu0 %489, %v372
      %v491 = vpop.permute.xlu0 %490
      %494 = vset.pattern.permute.xlu0 0
      %495 = vperm.xlu0 %494, %v373
      %v496 = vpop.permute.xlu0 %495
      %499 = vset.pattern.permute.xlu0 0
      %500 = vperm.xlu0 %499, %v374
      %v501 = vpop.permute.xlu0 %500
      %504 = vset.pattern.permute.xlu0 0
      %505 = vperm.xlu0 %504, %v375
      %v506 = vpop.permute.xlu0 %505
      %509 = vset.pattern.permute.xlu0 0
      %510 = vperm.xlu0 %509, %v376
      %v511 = vpop.permute.xlu0 %510
      %514 = vset.pattern.permute.xlu0 0
      %515 = vperm.xlu0 %514, %v377
      %v516 = vpop.permute.xlu0 %515
      %519 = vset.pattern.permute.xlu0 0
      %520 = vperm.xlu0 %519, %v378
      %v521 = vpop.permute.xlu0 %520
      %524 = vset.pattern.permute.xlu0 0
      %525 = vperm.xlu0 %524, %v379
      %v526 = vpop.permute.xlu0 %525
      %529 = vset.pattern.permute.xlu0 0
      %530 = vperm.xlu0 %529, %v380
      %v531 = vpop.permute.xlu0 %530
      %534 = vset.pattern.permute.xlu0 0
      %535 = vperm.xlu0 %534, %v381
      %v536 = vpop.permute.xlu0 %535
      %539 = vset.pattern.permute.xlu0 0
      %540 = vperm.xlu0 %539, %v382
      %v541 = vpop.permute.xlu0 %540
      %544 = vset.pattern.permute.xlu0 0
      %545 = vperm.xlu0 %544, %v383
      %v546 = vpop.permute.xlu0 %545
      %549 = vset.pattern.permute.xlu0 0
      %550 = vperm.xlu0 %549, %v384
      %v551 = vpop.permute.xlu0 %550
      %554 = vset.pattern.permute.xlu0 0
      %555 = vperm.xlu0 %554, %v385
      %v556 = vpop.permute.xlu0 %555
      %559 = vset.pattern.permute.xlu0 0
      %560 = vperm.xlu0 %559, %v386
      %v561 = vpop.permute.xlu0 %560
      %564 = vset.pattern.permute.xlu0 0
      %565 = vperm.xlu0 %564, %v387
      %v566 = vpop.permute.xlu0 %565
      %569 = vset.pattern.permute.xlu0 0
      %570 = vperm.xlu0 %569, %v388
      %v571 = vpop.permute.xlu0 %570
      %574 = vset.pattern.permute.xlu0 0
      %575 = vperm.xlu0 %574, %v389
      %v576 = vpop.permute.xlu0 %575
      %579 = vset.pattern.permute.xlu0 0
      %580 = vperm.xlu0 %579, %v390
      %v581 = vpop.permute.xlu0 %580
      %584 = vset.pattern.permute.xlu0 0
      %585 = vperm.xlu0 %584, %v391
      %v586 = vpop.permute.xlu0 %585
      %589 = vset.pattern.permute.xlu0 0
      %590 = vperm.xlu0 %589, %v392
      %v591 = vpop.permute.xlu0 %590
      %594 = vset.pattern.permute.xlu0 0
      %595 = vperm.xlu0 %594, %v393
      %v596 = vpop.permute.xlu0 %595
      %599 = vset.pattern.permute.xlu0 0
      %600 = vperm.xlu0 %599, %v394
      %v601 = vpop.permute.xlu0 %600
      %604 = vset.pattern.permute.xlu0 0
      %605 = vperm.xlu0 %604, %v395
      %v606 = vpop.permute.xlu0 %605
      %609 = vset.pattern.permute.xlu0 0
      %610 = vperm.xlu0 %609, %v396
      %v611 = vpop.permute.xlu0 %610
      %614 = vset.pattern.permute.xlu0 0
      %615 = vperm.xlu0 %614, %v397
      %v616 = vpop.permute.xlu0 %615
      %619 = vset.pattern.permute.xlu0 0
      %620 = vperm.xlu0 %619, %v398
      %v621 = vpop.permute.xlu0 %620
      %624 = vset.pattern.permute.xlu0 0
      %625 = vperm.xlu0 %624, %v399
      %v626 = vpop.permute.xlu0 %625
      %629 = vset.pattern.permute.xlu0 0
      %630 = vperm.xlu0 %629, %v400
      %v631 = vpop.permute.xlu0 %630
      %634 = vset.pattern.permute.xlu0 0
      %635 = vperm.xlu0 %634, %v401
      %v636 = vpop.permute.xlu0 %635
      %639 = vset.pattern.permute.xlu0 0
      %640 = vperm.xlu0 %639, %v402
      %v641 = vpop.permute.xlu0 %640
      %643 = vmatprep.subr.mxu0 0.0
      %644 = vmatpush1.msra.mxu0 %v291
      %645 = vmatprep.subr.mxu0 0.0
      %646 = vmatpush1.msra.mxu0 %v292
      %647 = vmatprep.subr.mxu0 0.0
      %648 = vmatpush1.msra.mxu0 %v293
      %649 = vmatprep.subr.mxu0 0.0
      %650 = vmatpush1.msra.mxu0 %v294
      %651 = vmatprep.subr.mxu0 0.0
      %652 = vmatpush1.msra.mxu0 %v295
      %653 = vmatprep.subr.mxu0 0.0
      %654 = vmatpush1.msra.mxu0 %v296
      %655 = vmatprep.subr.mxu0 0.0
      %656 = vmatpush1.msra.mxu0 %v297
      %657 = vmatprep.subr.mxu0 0.0
      %658 = vmatpush1.msra.mxu0 %v298
      %659 = vmatprep.subr.mxu0 0.0
      %660 = vmatpush1.msra.mxu0 %v299
      %661 = vmatprep.subr.mxu0 0.0
      %662 = vmatpush1.msra.mxu0 %v300
      %663 = vmatprep.subr.mxu0 0.0
      %664 = vmatpush1.msra.mxu0 %v301
      %665 = vmatprep.subr.mxu0 0.0
      %666 = vmatpush1.msra.mxu0 %v302
      %667 = vmatprep.subr.mxu0 0.0
      %668 = vmatpush1.msra.mxu0 %v303
      %669 = vmatprep.subr.mxu0 0.0
      %670 = vmatpush1.msra.mxu0 %v304
      %671 = vmatprep.subr.mxu0 0.0
      %672 = vmatpush1.msra.mxu0 %v305
      %673 = vmatprep.subr.mxu0 0.0
      %674 = vmatpush1.msra.mxu0 %v306
      %675 = vmatprep.subr.mxu0 0.0
      %676 = vmatpush1.msra.mxu0 0.0
      %677 = vmatprep.subr.mxu0 0.0
      %678 = vmatpush1.msra.mxu0 0.0
      %679 = vmatprep.subr.mxu0 0.0
      %680 = vmatpush1.msra.mxu0 0.0
      %681 = vmatprep.subr.mxu0 0.0
      %682 = vmatpush1.msra.mxu0 0.0
      %683 = vmatprep.subr.mxu0 0.0
      %684 = vmatpush1.msra.mxu0 0.0
      %685 = vmatprep.subr.mxu0 0.0
      %686 = vmatpush1.msra.mxu0 0.0
      %687 = vmatprep.subr.mxu0 0.0
      %688 = vmatpush1.msra.mxu0 0.0
      %689 = vmatprep.subr.mxu0 0.0
      %690 = vmatpush1.msra.mxu0 0.0
      %691 = vmatprep.subr.mxu0 0.0
      %692 = vmatpush1.msra.mxu0 0.0
      %693 = vmatprep.subr.mxu0 0.0
      %694 = vmatpush1.msra.mxu0 0.0
      %695 = vmatprep.subr.mxu0 0.0
      %696 = vmatpush1.msra.mxu0 0.0
      %697 = vmatprep.subr.mxu0 0.0
      %698 = vmatpush1.msra.mxu0 0.0
      %699 = vmatprep.subr.mxu0 0.0
      %700 = vmatpush1.msra.mxu0 0.0
      %701 = vmatprep.subr.mxu0 0.0
      %702 = vmatpush1.msra.mxu0 0.0
      %703 = vmatprep.subr.mxu0 0.0
      %704 = vmatpush1.msra.mxu0 0.0
      %705 = vmatprep.subr.mxu0 0.0
      %706 = vmatpush1.msra.mxu0 0.0
      %707 = vmatprep.mubr.f32.mxu0 0.0
      %708 = vmatmul.mubr.f32.gmra.mrb[0].mxu0 %v307
      %v709 = vpop.f32.mrb[0].mxu0
      %v710 = vadd.f32 %v406, %v709
      %v711 = vpop.f32.mrb[0].mxu0
      %712 = vmatprep.mubr.f32.mxu0 0.0
      %713 = vmatmul.mubr.f32.gmra.mrb[0].mxu0 %v308
      %v714 = vpop.f32.mrb[0].mxu0
      %v715 = vadd.f32 %v411, %v714
      %v716 = vpop.f32.mrb[0].mxu0
      %717 = vmatprep.mubr.f32.mxu0 0.0
      %718 = vmatmul.mubr.f32.gmra.mrb[0].mxu0 %v309
      %v719 = vpop.f32.mrb[0].mxu0
      %v720 = vadd.f32 %v416, %v719
      %v721 = vpop.f32.mrb[0].mxu0
      %722 = vmatprep.mubr.f32.mxu0 0.0
      %723 = vmatmul.mubr.f32.gmra.mrb[0].mxu0 %v310
      %v724 = vpop.f32.mrb[0].mxu0
      %v725 = vadd.f32 %v421, %v724
      %v726 = vpop.f32.mrb[0].mxu0
      %727 = vmatprep.mubr.f32.mxu0 0.0
      %728 = vmatmul.mubr.f32.gmra.mrb[0].mxu0 %v311
      %v729 = vpop.f32.mrb[0].mxu0
      %v730 = vadd.f32 %v426, %v729
      %v731 = vpop.f32.mrb[0].mxu0
      %732 = vmatprep.mubr.f32.mxu0 0.0
      %733 = vmatmul.mubr.f32.gmra.mrb[0].mxu0 %v312
      %v734 = vpop.f32.mrb[0].mxu0
      %v735 = vadd.f32 %v431, %v734
      %v736 = vpop.f32.mrb[0].mxu0
      %737 = vmatprep.mubr.f32.mxu0 0.0
      %738 = vmatmul.mubr.f32.gmra.mrb[0].mxu0 %v313
      %v739 = vpop.f32.mrb[0].mxu0
      %v740 = vadd.f32 %v436, %v739
      %v741 = vpop.f32.mrb[0].mxu0
      %742 = vmatprep.mubr.f32.mxu0 0.0
      %743 = vmatmul.mubr.f32.gmra.mrb[0].mxu0 %v314
      %v744 = vpop.f32.mrb[0].mxu0
      %v745 = vadd.f32 %v441, %v744
      %v746 = vpop.f32.mrb[0].mxu0
      %747 = vmatprep.mubr.f32.mxu0 0.0
      %748 = vmatmul.mubr.f32.gmra.mrb[0].mxu0 %v315
      %v749 = vpop.f32.mrb[0].mxu0
      %v750 = vadd.f32 %v446, %v749
      %v751 = vpop.f32.mrb[0].mxu0
      %752 = vmatprep.mubr.f32.mxu0 0.0
      %753 = vmatmul.mubr.f32.gmra.mrb[0].mxu0 %v316
      %v754 = vpop.f32.mrb[0].mxu0
      %v755 = vadd.f32 %v451, %v754
      %v756 = vpop.f32.mrb[0].mxu0
      %757 = vmatprep.mubr.f32.mxu0 0.0
      %758 = vmatmul.mubr.f32.gmra.mrb[0].mxu0 %v317
      %v759 = vpop.f32.mrb[0].mxu0
      %v760 = vadd.f32 %v456, %v759
      %v761 = vpop.f32.mrb[0].mxu0
      %762 = vmatprep.mubr.f32.mxu0 0.0
      %763 = vmatmul.mubr.f32.gmra.mrb[0].mxu0 %v318
      %v764 = vpop.f32.mrb[0].mxu0
      %v765 = vadd.f32 %v461, %v764
      %v766 = vpop.f32.mrb[0].mxu0
      %767 = vmatprep.mubr.f32.mxu0 0.0
      %768 = vmatmul.mubr.f32.gmra.mrb[0].mxu0 %v319
      %v769 = vpop.f32.mrb[0].mxu0
      %v770 = vadd.f32 %v466, %v769
      %v771 = vpop.f32.mrb[0].mxu0
      %772 = vmatprep.mubr.f32.mxu0 0.0
      %773 = vmatmul.mubr.f32.gmra.mrb[0].mxu0 %v320
      %v774 = vpop.f32.mrb[0].mxu0
      %v775 = vadd.f32 %v471, %v774
      %v776 = vpop.f32.mrb[0].mxu0
      %777 = vmatprep.mubr.f32.mxu0 0.0
      %778 = vmatmul.mubr.f32.gmra.mrb[0].mxu0 %v321
      %v779 = vpop.f32.mrb[0].mxu0
      %v780 = vadd.f32 %v476, %v779
      %v781 = vpop.f32.mrb[0].mxu0
      %782 = vmatprep.mubr.f32.mxu0 0.0
      %783 = vmatmul.mubr.f32.gmra.mrb[0].mxu0 %v322
      %v784 = vpop.f32.mrb[0].mxu0
      %v785 = vadd.f32 %v481, %v784
      %v786 = vpop.f32.mrb[0].mxu0
      %787 = vmatprep.mubr.f32.mxu0 0.0
      %788 = vmatmul.mubr.f32.gmra.mrb[0].mxu0 %v323
      %v789 = vpop.f32.mrb[0].mxu0
      %v790 = vadd.f32 %v486, %v789
      %v791 = vpop.f32.mrb[0].mxu0
      %792 = vmatprep.mubr.f32.mxu0 0.0
      %793 = vmatmul.mubr.f32.gmra.mrb[0].mxu0 %v324
      %v794 = vpop.f32.mrb[0].mxu0
      %v795 = vadd.f32 %v491, %v794
      %v796 = vpop.f32.mrb[0].mxu0
      %797 = vmatprep.mubr.f32.mxu0 0.0
      %798 = vmatmul.mubr.f32.gmra.mrb[0].mxu0 %v325
      %v799 = vpop.f32.mrb[0].mxu0
      %v800 = vadd.f32 %v496, %v799
      %v801 = vpop.f32.mrb[0].mxu0
      %802 = vmatprep.mubr.f32.mxu0 0.0
      %803 = vmatmul.mubr.f32.gmra.mrb[0].mxu0 %v326
      %v804 = vpop.f32.mrb[0].mxu0
      %v805 = vadd.f32 %v501, %v804
      %v806 = vpop.f32.mrb[0].mxu0
      %807 = vmatprep.mubr.f32.mxu0 0.0
      %808 = vmatmul.mubr.f32.gmra.mrb[0].mxu0 %v327
      %v809 = vpop.f32.mrb[0].mxu0
      %v810 = vadd.f32 %v506, %v809
      %v811 = vpop.f32.mrb[0].mxu0
      %812 = vmatprep.mubr.f32.mxu0 0.0
      %813 = vmatmul.mubr.f32.gmra.mrb[0].mxu0 %v328
      %v814 = vpop.f32.mrb[0].mxu0
      %v815 = vadd.f32 %v511, %v814
      %v816 = vpop.f32.mrb[0].mxu0
      %817 = vmatprep.mubr.f32.mxu0 0.0
      %818 = vmatmul.mubr.f32.gmra.mrb[0].mxu0 %v329
      %v819 = vpop.f32.mrb[0].mxu0
      %v820 = vadd.f32 %v516, %v819
      %v821 = vpop.f32.mrb[0].mxu0
      %822 = vmatprep.mubr.f32.mxu0 0.0
      %823 = vmatmul.mubr.f32.gmra.mrb[0].mxu0 %v330
      %v824 = vpop.f32.mrb[0].mxu0
      %v825 = vadd.f32 %v521, %v824
      %v826 = vpop.f32.mrb[0].mxu0
      %827 = vmatprep.mubr.f32.mxu0 0.0
      %828 = vmatmul.mubr.f32.gmra.mrb[0].mxu0 %v331
      %v829 = vpop.f32.mrb[0].mxu0
      %v830 = vadd.f32 %v526, %v829
      %v831 = vpop.f32.mrb[0].mxu0
      %832 = vmatprep.mubr.f32.mxu0 0.0
      %833 = vmatmul.mubr.f32.gmra.mrb[0].mxu0 %v332
      %v834 = vpop.f32.mrb[0].mxu0
      %v835 = vadd.f32 %v531, %v834
      %v836 = vpop.f32.mrb[0].mxu0
      %837 = vmatprep.mubr.f32.mxu0 0.0
      %838 = vmatmul.mubr.f32.gmra.mrb[0].mxu0 %v333
      %v839 = vpop.f32.mrb[0].mxu0
      %v840 = vadd.f32 %v536, %v839
      %v841 = vpop.f32.mrb[0].mxu0
      %842 = vmatprep.mubr.f32.mxu0 0.0
      %843 = vmatmul.mubr.f32.gmra.mrb[0].mxu0 %v334
      %v844 = vpop.f32.mrb[0].mxu0
      %v845 = vadd.f32 %v541, %v844
      %v846 = vpop.f32.mrb[0].mxu0
      %847 = vmatprep.mubr.f32.mxu0 0.0
      %848 = vmatmul.mubr.f32.gmra.mrb[0].mxu0 %v335
      %v849 = vpop.f32.mrb[0].mxu0
      %v850 = vadd.f32 %v546, %v849
      %v851 = vpop.f32.mrb[0].mxu0
      %852 = vmatprep.mubr.f32.mxu0 0.0
      %853 = vmatmul.mubr.f32.gmra.mrb[0].mxu0 %v336
      %v854 = vpop.f32.mrb[0].mxu0
      %v855 = vadd.f32 %v551, %v854
      %v856 = vpop.f32.mrb[0].mxu0
      %857 = vmatprep.mubr.f32.mxu0 0.0
      %858 = vmatmul.mubr.f32.gmra.mrb[0].mxu0 %v337
      %v859 = vpop.f32.mrb[0].mxu0
      %v860 = vadd.f32 %v556, %v859
      %v861 = vpop.f32.mrb[0].mxu0
      %862 = vmatprep.mubr.f32.mxu0 0.0
      %863 = vmatmul.mubr.f32.gmra.mrb[0].mxu0 %v338
      %v864 = vpop.f32.mrb[0].mxu0
      %v865 = vadd.f32 %v561, %v864
      %v866 = vpop.f32.mrb[0].mxu0
      %867 = vmatprep.mubr.f32.mxu0 0.0
      %868 = vmatmul.mubr.f32.gmra.mrb[0].mxu0 %v339
      %v869 = vpop.f32.mrb[0].mxu0
      %v870 = vadd.f32 %v566, %v869
      %v871 = vpop.f32.mrb[0].mxu0
      %872 = vmatprep.mubr.f32.mxu0 0.0
      %873 = vmatmul.mubr.f32.gmra.mrb[0].mxu0 %v340
      %v874 = vpop.f32.mrb[0].mxu0
      %v875 = vadd.f32 %v571, %v874
      %v876 = vpop.f32.mrb[0].mxu0
      %877 = vmatprep.mubr.f32.mxu0 0.0
      %878 = vmatmul.mubr.f32.gmra.mrb[0].mxu0 %v341
      %v879 = vpop.f32.mrb[0].mxu0
      %v880 = vadd.f32 %v576, %v879
      %v881 = vpop.f32.mrb[0].mxu0
      %882 = vmatprep.mubr.f32.mxu0 0.0
      %883 = vmatmul.mubr.f32.gmra.mrb[0].mxu0 %v342
      %v884 = vpop.f32.mrb[0].mxu0
      %v885 = vadd.f32 %v581, %v884
      %v886 = vpop.f32.mrb[0].mxu0
      %887 = vmatprep.mubr.f32.mxu0 0.0
      %888 = vmatmul.mubr.f32.gmra.mrb[0].mxu0 %v343
      %v889 = vpop.f32.mrb[0].mxu0
      %v890 = vadd.f32 %v586, %v889
      %v891 = vpop.f32.mrb[0].mxu0
      %892 = vmatprep.mubr.f32.mxu0 0.0
      %893 = vmatmul.mubr.f32.gmra.mrb[0].mxu0 %v344
      %v894 = vpop.f32.mrb[0].mxu0
      %v895 = vadd.f32 %v591, %v894
      %v896 = vpop.f32.mrb[0].mxu0
      %897 = vmatprep.mubr.f32.mxu0 0.0
      %898 = vmatmul.mubr.f32.gmra.mrb[0].mxu0 %v345
      %v899 = vpop.f32.mrb[0].mxu0
      %v900 = vadd.f32 %v596, %v899
      %v901 = vpop.f32.mrb[0].mxu0
      %902 = vmatprep.mubr.f32.mxu0 0.0
      %903 = vmatmul.mubr.f32.gmra.mrb[0].mxu0 %v346
      %v904 = vpop.f32.mrb[0].mxu0
      %v905 = vadd.f32 %v601, %v904
      %v906 = vpop.f32.mrb[0].mxu0
      %907 = vmatprep.mubr.f32.mxu0 0.0
      %908 = vmatmul.mubr.f32.gmra.mrb[0].mxu0 %v347
      %v909 = vpop.f32.mrb[0].mxu0
      %v910 = vadd.f32 %v606, %v909
      %v911 = vpop.f32.mrb[0].mxu0
      %912 = vmatprep.mubr.f32.mxu0 0.0
      %913 = vmatmul.mubr.f32.gmra.mrb[0].mxu0 %v348
      %v914 = vpop.f32.mrb[0].mxu0
      %v915 = vadd.f32 %v611, %v914
      %v916 = vpop.f32.mrb[0].mxu0
      %917 = vmatprep.mubr.f32.mxu0 0.0
      %918 = vmatmul.mubr.f32.gmra.mrb[0].mxu0 %v349
      %v919 = vpop.f32.mrb[0].mxu0
      %v920 = vadd.f32 %v616, %v919
      %v921 = vpop.f32.mrb[0].mxu0
      %922 = vmatprep.mubr.f32.mxu0 0.0
      %923 = vmatmul.mubr.f32.gmra.mrb[0].mxu0 %v350
      %v924 = vpop.f32.mrb[0].mxu0
      %v925 = vadd.f32 %v621, %v924
      %v926 = vpop.f32.mrb[0].mxu0
      %927 = vmatprep.mubr.f32.mxu0 0.0
      %928 = vmatmul.mubr.f32.gmra.mrb[0].mxu0 %v351
      %v929 = vpop.f32.mrb[0].mxu0
      %v930 = vadd.f32 %v626, %v929
      %v931 = vpop.f32.mrb[0].mxu0
      %932 = vmatprep.mubr.f32.mxu0 0.0
      %933 = vmatmul.mubr.f32.gmra.mrb[0].mxu0 %v352
      %v934 = vpop.f32.mrb[0].mxu0
      %v935 = vadd.f32 %v631, %v934
      %v936 = vpop.f32.mrb[0].mxu0
      %937 = vmatprep.mubr.f32.mxu0 0.0
      %938 = vmatmul.mubr.f32.gmra.mrb[0].mxu0 %v353
      %v939 = vpop.f32.mrb[0].mxu0
      %v940 = vadd.f32 %v636, %v939
      %v941 = vpop.f32.mrb[0].mxu0
      %942 = vmatprep.mubr.f32.mxu0 0.0
      %943 = vmatmul.mubr.f32.gmra.mrb[0].mxu0 %v354
      %v944 = vpop.f32.mrb[0].mxu0
      %v945 = vadd.f32 %v641, %v944
      %v946 = vpop.f32.mrb[0].mxu0
      %947 = vdwg.mxu0
      %v948 = vld [vmem:[%s3] sm:$0xff]
      %v949 = vld [vmem:[%s3 + $0x8] sm:$0xff]
      %v950 = vld [vmem:[%s3 + $0x10] sm:$0xff]
      %v951 = vld [vmem:[%s3 + $0x18] sm:$0xff]
      %v952 = vld [vmem:[%s3 + $0x20] sm:$0xff]
      %v953 = vld [vmem:[%s3 + $0x28] sm:$0xff]
      %v954 = vld [vmem:[%s3 + $0x30] sm:$0xff]
      %v955 = vld [vmem:[%s3 + $0x38] sm:$0xff]
      %v956 = vld [vmem:[%s3 + $0x40] sm:$0xff]
      %v957 = vld [vmem:[%s3 + $0x48] sm:$0xff]
      %v958 = vld [vmem:[%s3 + $0x50] sm:$0xff]
      %v959 = vld [vmem:[%s3 + $0x58] sm:$0xff]
      %v960 = vld [vmem:[%s3 + $0x60] sm:$0xff]
      %v961 = vld [vmem:[%s3 + $0x68] sm:$0xff]
      %v962 = vld [vmem:[%s3 + $0x70] sm:$0xff]
      %v963 = vld [vmem:[%s3 + $0x78] sm:$0xff]
      %vm964 = vcmask 130048
      %v966 = vsel %vm964, %v710, 0
      %v969 = vsel %vm964, %v715, 0
      %v972 = vsel %vm964, %v720, 0
      %v975 = vsel %vm964, %v725, 0
      %v978 = vsel %vm964, %v730, 0
      %v981 = vsel %vm964, %v735, 0
      %v984 = vsel %vm964, %v740, 0
      %v987 = vsel %vm964, %v745, 0
      %v990 = vsel %vm964, %v750, 0
      %v993 = vsel %vm964, %v755, 0
      %v996 = vsel %vm964, %v760, 0
      %v999 = vsel %vm964, %v765, 0
      %v1002 = vsel %vm964, %v770, 0
      %v1005 = vsel %vm964, %v775, 0
      %v1008 = vsel %vm964, %v780, 0
      %v1011 = vsel %vm964, %v785, 0
      %v1014 = vsel %vm964, %v790, 0
      %v1017 = vsel %vm964, %v795, 0
      %v1020 = vsel %vm964, %v800, 0
      %v1023 = vsel %vm964, %v805, 0
      %v1026 = vsel %vm964, %v810, 0
      %v1029 = vsel %vm964, %v815, 0
      %v1032 = vsel %vm964, %v820, 0
      %v1035 = vsel %vm964, %v825, 0
      %v1038 = vsel %vm964, %v830, 0
      %v1041 = vsel %vm964, %v835, 0
      %v1044 = vsel %vm964, %v840, 0
      %v1047 = vsel %vm964, %v845, 0
      %v1050 = vsel %vm964, %v850, 0
      %v1053 = vsel %vm964, %v855, 0
      %v1056 = vsel %vm964, %v860, 0
      %v1059 = vsel %vm964, %v865, 0
      %1061 = vmatprep.subr.mxu0 0.0
      %1062 = vmatpush1.xpose.msra.mxu0 %v1014
      %1063 = vmatprep.subr.mxu0 0.0
      %1064 = vmatpush1.xpose.msra.mxu0 %v1017
      %1065 = vmatprep.subr.mxu0 0.0
      %1066 = vmatpush1.xpose.msra.mxu0 %v1020
      %1067 = vmatprep.subr.mxu0 0.0
      %1068 = vmatpush1.xpose.msra.mxu0 %v1023
      %1069 = vmatprep.subr.mxu0 0.0
      %1070 = vmatpush1.xpose.msra.mxu0 %v1026
      %1071 = vmatprep.subr.mxu0 0.0
      %1072 = vmatpush1.xpose.msra.mxu0 %v1029
      %1073 = vmatprep.subr.mxu0 0.0
      %1074 = vmatpush1.xpose.msra.mxu0 %v1032
      %1075 = vmatprep.subr.mxu0 0.0
      %1076 = vmatpush1.xpose.msra.mxu0 %v1035
      %1077 = vmatprep.subr.mxu0 0.0
      %1078 = vmatpush1.xpose.msra.mxu0 %v1038
      %1079 = vmatprep.subr.mxu0 0.0
      %1080 = vmatpush1.xpose.msra.mxu0 %v1041
      %1081 = vmatprep.subr.mxu0 0.0
      %1082 = vmatpush1.xpose.msra.mxu0 %v1044
      %1083 = vmatprep.subr.mxu0 0.0
      %1084 = vmatpush1.xpose.msra.mxu0 %v1047
      %1085 = vmatprep.subr.mxu0 0.0
      %1086 = vmatpush1.xpose.msra.mxu0 %v1050
      %1087 = vmatprep.subr.mxu0 0.0
      %1088 = vmatpush1.xpose.msra.mxu0 %v1053
      %1089 = vmatprep.subr.mxu0 0.0
      %1090 = vmatpush1.xpose.msra.mxu0 %v1056
      %1091 = vmatprep.subr.mxu0 0.0
      %1092 = vmatpush1.xpose.msra.mxu0 %v1059
      %1093 = vmatprep.subr.mxu0 0.0
      %1094 = vmatpush1.xpose.msra.mxu0 0.0
      %1095 = vmatprep.subr.mxu0 0.0
      %1096 = vmatpush1.xpose.msra.mxu0 0.0
      %1097 = vmatprep.subr.mxu0 0.0
      %1098 = vmatpush1.xpose.msra.mxu0 0.0
      %1099 = vmatprep.subr.mxu0 0.0
      %1100 = vmatpush1.xpose.msra.mxu0 0.0
      %1101 = vmatprep.subr.mxu0 0.0
      %1102 = vmatpush1.xpose.msra.mxu0 0.0
      %1103 = vmatprep.subr.mxu0 0.0
      %1104 = vmatpush1.xpose.msra.mxu0 0.0
      %1105 = vmatprep.subr.mxu0 0.0
      %1106 = vmatpush1.xpose.msra.mxu0 0.0
      %1107 = vmatprep.subr.mxu0 0.0
      %1108 = vmatpush1.xpose.msra.mxu0 0.0
      %1109 = vmatprep.subr.mxu0 0.0
      %1110 = vmatpush1.xpose.msra.mxu0 0.0
      %1111 = vmatprep.subr.mxu0 0.0
      %1112 = vmatpush1.xpose.msra.mxu0 0.0
      %1113 = vmatprep.subr.mxu0 0.0
      %1114 = vmatpush1.xpose.msra.mxu0 0.0
      %1115 = vmatprep.subr.mxu0 0.0
      %1116 = vmatpush1.xpose.msra.mxu0 0.0
      %1117 = vmatprep.subr.mxu0 0.0
      %1118 = vmatpush1.xpose.msra.mxu0 0.0
      %1119 = vmatprep.subr.mxu0 0.0
      %1120 = vmatpush1.xpose.msra.mxu0 0.0
      %1121 = vmatprep.subr.mxu0 0.0
      %1122 = vmatpush1.xpose.msra.mxu0 0.0
      %1123 = vmatprep.subr.mxu0 0.0
      %1124 = vmatpush1.xpose.msra.mxu0 0.0
      %1125 = vmatprep.mubr.f32.mxu0 0.0
      %1126 = vmatmul.mubr.f32.gmra.mrb[0].mxu0 %v966
      %v1127 = vpop.f32.mrb[0].mxu0
      %v1128 = vadd.f32 %v948, %v1127
      %v1129 = vpop.f32.mrb[0].mxu0
      %1130 = vmatprep.mubr.f32.mxu0 0.0
      %1131 = vmatmul.mubr.f32.gmra.mrb[0].mxu0 %v969
      %v1132 = vpop.f32.mrb[0].mxu0
      %v1133 = vadd.f32 %v949, %v1132
      %v1134 = vpop.f32.mrb[0].mxu0
      %1135 = vmatprep.mubr.f32.mxu0 0.0
      %1136 = vmatmul.mubr.f32.gmra.mrb[0].mxu0 %v972
      %v1137 = vpop.f32.mrb[0].mxu0
      %v1138 = vadd.f32 %v950, %v1137
      %v1139 = vpop.f32.mrb[0].mxu0
      %1140 = vmatprep.mubr.f32.mxu0 0.0
      %1141 = vmatmul.mubr.f32.gmra.mrb[0].mxu0 %v975
      %v1142 = vpop.f32.mrb[0].mxu0
      %v1143 = vadd.f32 %v951, %v1142
      %v1144 = vpop.f32.mrb[0].mxu0
      %1145 = vmatprep.mubr.f32.mxu0 0.0
      %1146 = vmatmul.mubr.f32.gmra.mrb[0].mxu0 %v978
      %v1147 = vpop.f32.mrb[0].mxu0
      %v1148 = vadd.f32 %v952, %v1147
      %v1149 = vpop.f32.mrb[0].mxu0
      %1150 = vmatprep.mubr.f32.mxu0 0.0
      %1151 = vmatmul.mubr.f32.gmra.mrb[0].mxu0 %v981
      %v1152 = vpop.f32.mrb[0].mxu0
      %v1153 = vadd.f32 %v953, %v1152
      %v1154 = vpop.f32.mrb[0].mxu0
      %1155 = vmatprep.mubr.f32.mxu0 0.0
      %1156 = vmatmul.mubr.f32.gmra.mrb[0].mxu0 %v984
      %v1157 = vpop.f32.mrb[0].mxu0
      %v1158 = vadd.f32 %v954, %v1157
      %v1159 = vpop.f32.mrb[0].mxu0
      %1160 = vmatprep.mubr.f32.mxu0 0.0
      %1161 = vmatmul.mubr.f32.gmra.mrb[0].mxu0 %v987
      %v1162 = vpop.f32.mrb[0].mxu0
      %v1163 = vadd.f32 %v955, %v1162
      %v1164 = vpop.f32.mrb[0].mxu0
      %1165 = vmatprep.mubr.f32.mxu0 0.0
      %1166 = vmatmul.mubr.f32.gmra.mrb[0].mxu0 %v990
      %v1167 = vpop.f32.mrb[0].mxu0
      %v1168 = vadd.f32 %v956, %v1167
      %v1169 = vpop.f32.mrb[0].mxu0
      %1170 = vmatprep.mubr.f32.mxu0 0.0
      %1171 = vmatmul.mubr.f32.gmra.mrb[0].mxu0 %v993
      %v1172 = vpop.f32.mrb[0].mxu0
      %v1173 = vadd.f32 %v957, %v1172
      %v1174 = vpop.f32.mrb[0].mxu0
      %1175 = vmatprep.mubr.f32.mxu0 0.0
      %1176 = vmatmul.mubr.f32.gmra.mrb[0].mxu0 %v996
      %v1177 = vpop.f32.mrb[0].mxu0
      %v1178 = vadd.f32 %v958, %v1177
      %v1179 = vpop.f32.mrb[0].mxu0
      %1180 = vmatprep.mubr.f32.mxu0 0.0
      %1181 = vmatmul.mubr.f32.gmra.mrb[0].mxu0 %v999
      %v1182 = vpop.f32.mrb[0].mxu0
      %v1183 = vadd.f32 %v959, %v1182
      %v1184 = vpop.f32.mrb[0].mxu0
      %1185 = vmatprep.mubr.f32.mxu0 0.0
      %1186 = vmatmul.mubr.f32.gmra.mrb[0].mxu0 %v1002
      %v1187 = vpop.f32.mrb[0].mxu0
      %v1188 = vadd.f32 %v960, %v1187
      %v1189 = vpop.f32.mrb[0].mxu0
      %1190 = vmatprep.mubr.f32.mxu0 0.0
      %1191 = vmatmul.mubr.f32.gmra.mrb[0].mxu0 %v1005
      %v1192 = vpop.f32.mrb[0].mxu0
      %v1193 = vadd.f32 %v961, %v1192
      %v1194 = vpop.f32.mrb[0].mxu0
      %1195 = vmatprep.mubr.f32.mxu0 0.0
      %1196 = vmatmul.mubr.f32.gmra.mrb[0].mxu0 %v1008
      %v1197 = vpop.f32.mrb[0].mxu0
      %v1198 = vadd.f32 %v962, %v1197
      %v1199 = vpop.f32.mrb[0].mxu0
      %1200 = vmatprep.mubr.f32.mxu0 0.0
      %1201 = vmatmul.mubr.f32.gmra.mrb[0].mxu0 %v1011
      %v1202 = vpop.f32.mrb[0].mxu0
      %v1203 = vadd.f32 %v963, %v1202
      %v1204 = vpop.f32.mrb[0].mxu0
      %1205 = vdwg.mxu0
      %1206 = vmax.xlane.f32.xlu0 %v1128
      %v1207 = vpop.xlane.xlu0 %1206
      %1208 = vmax.xlane.f32.xlu0 %v1133
      %v1209 = vpop.xlane.xlu0 %1208
      %1210 = vmax.xlane.f32.xlu0 %v1138
      %v1211 = vpop.xlane.xlu0 %1210
      %1212 = vmax.xlane.f32.xlu0 %v1143
      %v1213 = vpop.xlane.xlu0 %1212
      %1214 = vmax.xlane.f32.xlu0 %v1148
      %v1215 = vpop.xlane.xlu0 %1214
      %1216 = vmax.xlane.f32.xlu0 %v1153
      %v1217 = vpop.xlane.xlu0 %1216
      %1218 = vmax.xlane.f32.xlu0 %v1158
      %v1219 = vpop.xlane.xlu0 %1218
      %1220 = vmax.xlane.f32.xlu0 %v1163
      %v1221 = vpop.xlane.xlu0 %1220
      %1222 = vmax.xlane.f32.xlu0 %v1168
      %v1223 = vpop.xlane.xlu0 %1222
      %1224 = vmax.xlane.f32.xlu0 %v1173
      %v1225 = vpop.xlane.xlu0 %1224
      %1226 = vmax.xlane.f32.xlu0 %v1178
      %v1227 = vpop.xlane.xlu0 %1226
      %1228 = vmax.xlane.f32.xlu0 %v1183
      %v1229 = vpop.xlane.xlu0 %1228
      %1230 = vmax.xlane.f32.xlu0 %v1188
      %v1231 = vpop.xlane.xlu0 %1230
      %1232 = vmax.xlane.f32.xlu0 %v1193
      %v1233 = vpop.xlane.xlu0 %1232
      %1234 = vmax.xlane.f32.xlu0 %v1198
      %v1235 = vpop.xlane.xlu0 %1234
      %1236 = vmax.xlane.f32.xlu0 %v1203
      %v1237 = vpop.xlane.xlu0 %1236
      %v1238 = vsub.f32 %v1128, %v1207
      %v1239 = vsub.f32 %v1133, %v1209
      %v1240 = vsub.f32 %v1138, %v1211
      %v1241 = vsub.f32 %v1143, %v1213
      %v1242 = vsub.f32 %v1148, %v1215
      %v1243 = vsub.f32 %v1153, %v1217
      %v1244 = vsub.f32 %v1158, %v1219
      %v1245 = vsub.f32 %v1163, %v1221
      %v1246 = vsub.f32 %v1168, %v1223
      %v1247 = vsub.f32 %v1173, %v1225
      %v1248 = vsub.f32 %v1178, %v1227
      %v1249 = vsub.f32 %v1183, %v1229
      %v1250 = vsub.f32 %v1188, %v1231
      %v1251 = vsub.f32 %v1193, %v1233
      %v1252 = vsub.f32 %v1198, %v1235
      %v1253 = vsub.f32 %v1203, %v1237
      %v1254 = vmul.f32 %v1238, 1.442695
      %v1255 = vpow.pop %v1254
      %v1256 = vmul.f32 %v1239, 1.442695
      %v1257 = vpow.pop %v1256
      %v1258 = vmul.f32 %v1240, 1.442695
      %v1259 = vpow.pop %v1258
      %v1260 = vmul.f32 %v1241, 1.442695
      %v1261 = vpow.pop %v1260
      %v1262 = vmul.f32 %v1242, 1.442695
      %v1263 = vpow.pop %v1262
      %v1264 = vmul.f32 %v1243, 1.442695
      %v1265 = vpow.pop %v1264
      %v1266 = vmul.f32 %v1244, 1.442695
      %v1267 = vpow.pop %v1266
      %v1268 = vmul.f32 %v1245, 1.442695
      %v1269 = vpow.pop %v1268
      %v1270 = vmul.f32 %v1246, 1.442695
      %v1271 = vpow.pop %v1270
      %v1272 = vmul.f32 %v1247, 1.442695
      %v1273 = vpow.pop %v1272
      %v1274 = vmul.f32 %v1248, 1.442695
      %v1275 = vpow.pop %v1274
      %v1276 = vmul.f32 %v1249, 1.442695
      %v1277 = vpow.pop %v1276
      %v1278 = vmul.f32 %v1250, 1.442695
      %v1279 = vpow.pop %v1278
      %v1280 = vmul.f32 %v1251, 1.442695
      %v1281 = vpow.pop %v1280
      %v1282 = vmul.f32 %v1252, 1.442695
      %v1283 = vpow.pop %v1282
      %v1284 = vmul.f32 %v1253, 1.442695
      %v1285 = vpow.pop %v1284
      %1286 = vadd.xlane.f32.xlu0 %v1255
      %v1287 = vpop.xlane.xlu0 %1286
      %1288 = vadd.xlane.f32.xlu0 %v1257
      %v1289 = vpop.xlane.xlu0 %1288
      %1290 = vadd.xlane.f32.xlu0 %v1259
      %v1291 = vpop.xlane.xlu0 %1290
      %1292 = vadd.xlane.f32.xlu0 %v1261
      %v1293 = vpop.xlane.xlu0 %1292
      %1294 = vadd.xlane.f32.xlu0 %v1263
      %v1295 = vpop.xlane.xlu0 %1294
      %1296 = vadd.xlane.f32.xlu0 %v1265
      %v1297 = vpop.xlane.xlu0 %1296
      %1298 = vadd.xlane.f32.xlu0 %v1267
      %v1299 = vpop.xlane.xlu0 %1298
      %1300 = vadd.xlane.f32.xlu0 %v1269
      %v1301 = vpop.xlane.xlu0 %1300
      %1302 = vadd.xlane.f32.xlu0 %v1271
      %v1303 = vpop.xlane.xlu0 %1302
      %1304 = vadd.xlane.f32.xlu0 %v1273
      %v1305 = vpop.xlane.xlu0 %1304
      %1306 = vadd.xlane.f32.xlu0 %v1275
      %v1307 = vpop.xlane.xlu0 %1306
      %1308 = vadd.xlane.f32.xlu0 %v1277
      %v1309 = vpop.xlane.xlu0 %1308
      %1310 = vadd.xlane.f32.xlu0 %v1279
      %v1311 = vpop.xlane.xlu0 %1310
      %1312 = vadd.xlane.f32.xlu0 %v1281
      %v1313 = vpop.xlane.xlu0 %1312
      %1314 = vadd.xlane.f32.xlu0 %v1283
      %v1315 = vpop.xlane.xlu0 %1314
      %1316 = vadd.xlane.f32.xlu0 %v1285
      %v1317 = vpop.xlane.xlu0 %1316
      %v1318 = vrcp.pop %v1287
      %v1319 = vmul.f32 %v1255, %v1318
      %v1320 = vrcp.pop %v1289
      %v1321 = vmul.f32 %v1257, %v1320
      %v1322 = vrcp.pop %v1291
      %v1323 = vmul.f32 %v1259, %v1322
      %v1324 = vrcp.pop %v1293
      %v1325 = vmul.f32 %v1261, %v1324
      %v1326 = vrcp.pop %v1295
      %v1327 = vmul.f32 %v1263, %v1326
      %v1328 = vrcp.pop %v1297
      %v1329 = vmul.f32 %v1265, %v1328
      %v1330 = vrcp.pop %v1299
      %v1331 = vmul.f32 %v1267, %v1330
      %v1332 = vrcp.pop %v1301
      %v1333 = vmul.f32 %v1269, %v1332
      %v1334 = vrcp.pop %v1303
      %v1335 = vmul.f32 %v1271, %v1334
      %v1336 = vrcp.pop %v1305
      %v1337 = vmul.f32 %v1273, %v1336
      %v1338 = vrcp.pop %v1307
      %v1339 = vmul.f32 %v1275, %v1338
      %v1340 = vrcp.pop %v1309
      %v1341 = vmul.f32 %v1277, %v1340
      %v1342 = vrcp.pop %v1311
      %v1343 = vmul.f32 %v1279, %v1342
      %v1344 = vrcp.pop %v1313
      %v1345 = vmul.f32 %v1281, %v1344
      %v1346 = vrcp.pop %v1315
      %v1347 = vmul.f32 %v1283, %v1346
      %v1348 = vrcp.pop %v1317
      %v1349 = vmul.f32 %v1285, %v1348
      %1350 = vmatprep.subr.mxu0 0.0
      %1351 = vmatpush1.msra.mxu0 %v870
      %1352 = vmatprep.subr.mxu0 0.0
      %1353 = vmatpush1.msra.mxu0 %v875
      %1354 = vmatprep.subr.mxu0 0.0
      %1355 = vmatpush1.msra.mxu0 %v880
      %1356 = vmatprep.subr.mxu0 0.0
      %1357 = vmatpush1.msra.mxu0 %v885
      %1358 = vmatprep.subr.mxu0 0.0
      %1359 = vmatpush1.msra.mxu0 %v890
      %1360 = vmatprep.subr.mxu0 0.0
      %1361 = vmatpush1.msra.mxu0 %v895
      %1362 = vmatprep.subr.mxu0 0.0
      %1363 = vmatpush1.msra.mxu0 %v900
      %1364 = vmatprep.subr.mxu0 0.0
      %1365 = vmatpush1.msra.mxu0 %v905
      %1366 = vmatprep.subr.mxu0 0.0
      %1367 = vmatpush1.msra.mxu0 %v910
      %1368 = vmatprep.subr.mxu0 0.0
      %1369 = vmatpush1.msra.mxu0 %v915
      %1370 = vmatprep.subr.mxu0 0.0
      %1371 = vmatpush1.msra.mxu0 %v920
      %1372 = vmatprep.subr.mxu0 0.0
      %1373 = vmatpush1.msra.mxu0 %v925
      %1374 = vmatprep.subr.mxu0 0.0
      %1375 = vmatpush1.msra.mxu0 %v930
      %1376 = vmatprep.subr.mxu0 0.0
      %1377 = vmatpush1.msra.mxu0 %v935
      %1378 = vmatprep.subr.mxu0 0.0
      %1379 = vmatpush1.msra.mxu0 %v940
      %1380 = vmatprep.subr.mxu0 0.0
      %1381 = vmatpush1.msra.mxu0 %v945
      %1382 = vmatprep.subr.mxu0 0.0
      %1383 = vmatpush1.msra.mxu0 0.0
      %1384 = vmatprep.subr.mxu0 0.0
      %1385 = vmatpush1.msra.mxu0 0.0
      %1386 = vmatprep.subr.mxu0 0.0
      %1387 = vmatpush1.msra.mxu0 0.0
      %1388 = vmatprep.subr.mxu0 0.0
      %1389 = vmatpush1.msra.mxu0 0.0
      %1390 = vmatprep.subr.mxu0 0.0
      %1391 = vmatpush1.msra.mxu0 0.0
      %1392 = vmatprep.subr.mxu0 0.0
      %1393 = vmatpush1.msra.mxu0 0.0
      %1394 = vmatprep.subr.mxu0 0.0
      %1395 = vmatpush1.msra.mxu0 0.0
      %1396 = vmatprep.subr.mxu0 0.0
      %1397 = vmatpush1.msra.mxu0 0.0
      %1398 = vmatprep.subr.mxu0 0.0
      %1399 = vmatpush1.msra.mxu0 0.0
      %1400 = vmatprep.subr.mxu0 0.0
      %1401 = vmatpush1.msra.mxu0 0.0
      %1402 = vmatprep.subr.mxu0 0.0
      %1403 = vmatpush1.msra.mxu0 0.0
      %1404 = vmatprep.subr.mxu0 0.0
      %1405 = vmatpush1.msra.mxu0 0.0
      %1406 = vmatprep.subr.mxu0 0.0
      %1407 = vmatpush1.msra.mxu0 0.0
      %1408 = vmatprep.subr.mxu0 0.0
      %1409 = vmatpush1.msra.mxu0 0.0
      %1410 = vmatprep.subr.mxu0 0.0
      %1411 = vmatpush1.msra.mxu0 0.0
      %1412 = vmatprep.subr.mxu0 0.0
      %1413 = vmatpush1.msra.mxu0 0.0
      %1414 = vmatprep.mubr.f32.mxu0 0.0
      %1415 = vmatmul.mubr.f32.gmra.mrb[0].mxu0 %v1319
      %v1416 = vpop.f32.mrb[0].mxu0
      %v1417 = vadd.f32 0.0, %v1416
      %v1418 = vpop.f32.mrb[0].mxu0
      %1419 = vmatprep.mubr.f32.mxu0 0.0
      %1420 = vmatmul.mubr.f32.gmra.mrb[0].mxu0 %v1321
      %v1421 = vpop.f32.mrb[0].mxu0
      %v1422 = vadd.f32 0.0, %v1421
      %v1423 = vpop.f32.mrb[0].mxu0
      %1424 = vmatprep.mubr.f32.mxu0 0.0
      %1425 = vmatmul.mubr.f32.gmra.mrb[0].mxu0 %v1323
      %v1426 = vpop.f32.mrb[0].mxu0
      %v1427 = vadd.f32 0.0, %v1426
      %v1428 = vpop.f32.mrb[0].mxu0
      %1429 = vmatprep.mubr.f32.mxu0 0.0
      %1430 = vmatmul.mubr.f32.gmra.mrb[0].mxu0 %v1325
      %v1431 = vpop.f32.mrb[0].mxu0
      %v1432 = vadd.f32 0.0, %v1431
      %v1433 = vpop.f32.mrb[0].mxu0
      %1434 = vmatprep.mubr.f32.mxu0 0.0
      %1435 = vmatmul.mubr.f32.gmra.mrb[0].mxu0 %v1327
      %v1436 = vpop.f32.mrb[0].mxu0
      %v1437 = vadd.f32 0.0, %v1436
      %v1438 = vpop.f32.mrb[0].mxu0
      %1439 = vmatprep.mubr.f32.mxu0 0.0
      %1440 = vmatmul.mubr.f32.gmra.mrb[0].mxu0 %v1329
      %v1441 = vpop.f32.mrb[0].mxu0
      %v1442 = vadd.f32 0.0, %v1441
      %v1443 = vpop.f32.mrb[0].mxu0
      %1444 = vmatprep.mubr.f32.mxu0 0.0
      %1445 = vmatmul.mubr.f32.gmra.mrb[0].mxu0 %v1331
      %v1446 = vpop.f32.mrb[0].mxu0
      %v1447 = vadd.f32 0.0, %v1446
      %v1448 = vpop.f32.mrb[0].mxu0
      %1449 = vmatprep.mubr.f32.mxu0 0.0
      %1450 = vmatmul.mubr.f32.gmra.mrb[0].mxu0 %v1333
      %v1451 = vpop.f32.mrb[0].mxu0
      %v1452 = vadd.f32 0.0, %v1451
      %v1453 = vpop.f32.mrb[0].mxu0
      %1454 = vmatprep.mubr.f32.mxu0 0.0
      %1455 = vmatmul.mubr.f32.gmra.mrb[0].mxu0 %v1335
      %v1456 = vpop.f32.mrb[0].mxu0
      %v1457 = vadd.f32 0.0, %v1456
      %v1458 = vpop.f32.mrb[0].mxu0
      %1459 = vmatprep.mubr.f32.mxu0 0.0
      %1460 = vmatmul.mubr.f32.gmra.mrb[0].mxu0 %v1337
      %v1461 = vpop.f32.mrb[0].mxu0
      %v1462 = vadd.f32 0.0, %v1461
      %v1463 = vpop.f32.mrb[0].mxu0
      %1464 = vmatprep.mubr.f32.mxu0 0.0
      %1465 = vmatmul.mubr.f32.gmra.mrb[0].mxu0 %v1339
      %v1466 = vpop.f32.mrb[0].mxu0
      %v1467 = vadd.f32 0.0, %v1466
      %v1468 = vpop.f32.mrb[0].mxu0
      %1469 = vmatprep.mubr.f32.mxu0 0.0
      %1470 = vmatmul.mubr.f32.gmra.mrb[0].mxu0 %v1341
      %v1471 = vpop.f32.mrb[0].mxu0
      %v1472 = vadd.f32 0.0, %v1471
      %v1473 = vpop.f32.mrb[0].mxu0
      %1474 = vmatprep.mubr.f32.mxu0 0.0
      %1475 = vmatmul.mubr.f32.gmra.mrb[0].mxu0 %v1343
      %v1476 = vpop.f32.mrb[0].mxu0
      %v1477 = vadd.f32 0.0, %v1476
      %v1478 = vpop.f32.mrb[0].mxu0
      %1479 = vmatprep.mubr.f32.mxu0 0.0
      %1480 = vmatmul.mubr.f32.gmra.mrb[0].mxu0 %v1345
      %v1481 = vpop.f32.mrb[0].mxu0
      %v1482 = vadd.f32 0.0, %v1481
      %v1483 = vpop.f32.mrb[0].mxu0
      %1484 = vmatprep.mubr.f32.mxu0 0.0
      %1485 = vmatmul.mubr.f32.gmra.mrb[0].mxu0 %v1347
      %v1486 = vpop.f32.mrb[0].mxu0
      %v1487 = vadd.f32 0.0, %v1486
      %v1488 = vpop.f32.mrb[0].mxu0
      %1489 = vmatprep.mubr.f32.mxu0 0.0
      %1490 = vmatmul.mubr.f32.gmra.mrb[0].mxu0 %v1349
      %v1491 = vpop.f32.mrb[0].mxu0
      %v1492 = vadd.f32 0.0, %v1491
      %v1493 = vpop.f32.mrb[0].mxu0
      %1494 = vdwg.mxu0
      %v1495 = vadd.f32 %v291, %v1417
      %v1496 = vadd.f32 %v292, %v1422
      %v1497 = vadd.f32 %v293, %v1427
      %v1498 = vadd.f32 %v294, %v1432
      %v1499 = vadd.f32 %v295, %v1437
      %v1500 = vadd.f32 %v296, %v1442
      %v1501 = vadd.f32 %v297, %v1447
      %v1502 = vadd.f32 %v298, %v1452
      %v1503 = vadd.f32 %v299, %v1457
      %v1504 = vadd.f32 %v300, %v1462
      %v1505 = vadd.f32 %v301, %v1467
      %v1506 = vadd.f32 %v302, %v1472
      %v1507 = vadd.f32 %v303, %v1477
      %v1508 = vadd.f32 %v304, %v1482
      %v1509 = vadd.f32 %v305, %v1487
      %v1510 = vadd.f32 %v306, %v1492
      %v1511 = vsel %vm964, %v1495, 0.0
      %1512 = vadd.xlane.f32.xlu0 %v1511
      %v1513 = vpop.xlane.xlu0 %1512
      %v1514 = vsel %vm964, %v1496, 0.0
      %1515 = vadd.xlane.f32.xlu0 %v1514
      %v1516 = vpop.xlane.xlu0 %1515
      %v1517 = vsel %vm964, %v1497, 0.0
      %1518 = vadd.xlane.f32.xlu0 %v1517
      %v1519 = vpop.xlane.xlu0 %1518
      %v1520 = vsel %vm964, %v1498, 0.0
      %1521 = vadd.xlane.f32.xlu0 %v1520
      %v1522 = vpop.xlane.xlu0 %1521
      %v1523 = vsel %vm964, %v1499, 0.0
      %1524 = vadd.xlane.f32.xlu0 %v1523
      %v1525 = vpop.xlane.xlu0 %1524
      %v1526 = vsel %vm964, %v1500, 0.0
      %1527 = vadd.xlane.f32.xlu0 %v1526
      %v1528 = vpop.xlane.xlu0 %1527
      %v1529 = vsel %vm964, %v1501, 0.0
      %1530 = vadd.xlane.f32.xlu0 %v1529
      %v1531 = vpop.xlane.xlu0 %1530
      %v1532 = vsel %vm964, %v1502, 0.0
      %1533 = vadd.xlane.f32.xlu0 %v1532
      %v1534 = vpop.xlane.xlu0 %1533
      %v1535 = vsel %vm964, %v1503, 0.0
      %1536 = vadd.xlane.f32.xlu0 %v1535
      %v1537 = vpop.xlane.xlu0 %1536
      %v1538 = vsel %vm964, %v1504, 0.0
      %1539 = vadd.xlane.f32.xlu0 %v1538
      %v1540 = vpop.xlane.xlu0 %1539
      %v1541 = vsel %vm964, %v1505, 0.0
      %1542 = vadd.xlane.f32.xlu0 %v1541
      %v1543 = vpop.xlane.xlu0 %1542
      %v1544 = vsel %vm964, %v1506, 0.0
      %1545 = vadd.xlane.f32.xlu0 %v1544
      %v1546 = vpop.xlane.xlu0 %1545
      %v1547 = vsel %vm964, %v1507, 0.0
      %1548 = vadd.xlane.f32.xlu0 %v1547
      %v1549 = vpop.xlane.xlu0 %1548
      %v1550 = vsel %vm964, %v1508, 0.0
      %1551 = vadd.xlane.f32.xlu0 %v1550
      %v1552 = vpop.xlane.xlu0 %1551
      %v1553 = vsel %vm964, %v1509, 0.0
      %1554 = vadd.xlane.f32.xlu0 %v1553
      %v1555 = vpop.xlane.xlu0 %1554
      %v1556 = vsel %vm964, %v1510, 0.0
      %1557 = vadd.xlane.f32.xlu0 %v1556
      %v1558 = vpop.xlane.xlu0 %1557
      %v1559 = vrcp.pop 16.0
      %v1560 = vmul.f32 %v1513, %v1559
      %v1561 = vmul.f32 %v1516, %v1559
      %v1562 = vmul.f32 %v1519, %v1559
      %v1563 = vmul.f32 %v1522, %v1559
      %v1564 = vmul.f32 %v1525, %v1559
      %v1565 = vmul.f32 %v1528, %v1559
      %v1566 = vmul.f32 %v1531, %v1559
      %v1567 = vmul.f32 %v1534, %v1559
      %v1568 = vmul.f32 %v1537, %v1559
      %v1569 = vmul.f32 %v1540, %v1559
      %v1570 = vmul.f32 %v1543, %v1559
      %v1571 = vmul.f32 %v1546, %v1559
      %v1572 = vmul.f32 %v1549, %v1559
      %v1573 = vmul.f32 %v1552, %v1559
      %v1574 = vmul.f32 %v1555, %v1559
      %v1575 = vmul.f32 %v1558, %v1559
      %v1576 = vsub.f32 %v1495, %v1560
      %v1577 = vsub.f32 %v1496, %v1561
      %v1578 = vsub.f32 %v1497, %v1562
      %v1579 = vsub.f32 %v1498, %v1563
      %v1580 = vsub.f32 %v1499, %v1564
      %v1581 = vsub.f32 %v1500, %v1565
      %v1582 = vsub.f32 %v1501, %v1566
      %v1583 = vsub.f32 %v1502, %v1567
      %v1584 = vsub.f32 %v1503, %v1568
      %v1585 = vsub.f32 %v1504, %v1569
      %v1586 = vsub.f32 %v1505, %v1570
      %v1587 = vsub.f32 %v1506, %v1571
      %v1588 = vsub.f32 %v1507, %v1572
      %v1589 = vsub.f32 %v1508, %v1573
      %v1590 = vsub.f32 %v1509, %v1574
      %v1591 = vsub.f32 %v1510, %v1575
      %v1592 = vmul.f32 %v1576, %v1576
      %v1593 = vmul.f32 %v1577, %v1577
      %v1594 = vmul.f32 %v1578, %v1578
      %v1595 = vmul.f32 %v1579, %v1579
      %v1596 = vmul.f32 %v1580, %v1580
      %v1597 = vmul.f32 %v1581, %v1581
      %v1598 = vmul.f32 %v1582, %v1582
      %v1599 = vmul.f32 %v1583, %v1583
      %v1600 = vmul.f32 %v1584, %v1584
      %v1601 = vmul.f32 %v1585, %v1585
      %v1602 = vmul.f32 %v1586, %v1586
      %v1603 = vmul.f32 %v1587, %v1587
      %v1604 = vmul.f32 %v1588, %v1588
      %v1605 = vmul.f32 %v1589, %v1589
      %v1606 = vmul.f32 %v1590, %v1590
      %v1607 = vmul.f32 %v1591, %v1591
      %v1608 = vsel %vm964, %v1592, 0.0
      %1609 = vadd.xlane.f32.xlu0 %v1608
      %v1610 = vpop.xlane.xlu0 %1609
      %v1611 = vsel %vm964, %v1593, 0.0
      %1612 = vadd.xlane.f32.xlu0 %v1611
      %v1613 = vpop.xlane.xlu0 %1612
      %v1614 = vsel %vm964, %v1594, 0.0
      %1615 = vadd.xlane.f32.xlu0 %v1614
      %v1616 = vpop.xlane.xlu0 %1615
      %v1617 = vsel %vm964, %v1595, 0.0
      %1618 = vadd.xlane.f32.xlu0 %v1617
      %v1619 = vpop.xlane.xlu0 %1618
      %v1620 = vsel %vm964, %v1596, 0.0
      %1621 = vadd.xlane.f32.xlu0 %v1620
      %v1622 = vpop.xlane.xlu0 %1621
      %v1623 = vsel %vm964, %v1597, 0.0
      %1624 = vadd.xlane.f32.xlu0 %v1623
      %v1625 = vpop.xlane.xlu0 %1624
      %v1626 = vsel %vm964, %v1598, 0.0
      %1627 = vadd.xlane.f32.xlu0 %v1626
      %v1628 = vpop.xlane.xlu0 %1627
      %v1629 = vsel %vm964, %v1599, 0.0
      %1630 = vadd.xlane.f32.xlu0 %v1629
      %v1631 = vpop.xlane.xlu0 %1630
      %v1632 = vsel %vm964, %v1600, 0.0
      %1633 = vadd.xlane.f32.xlu0 %v1632
      %v1634 = vpop.xlane.xlu0 %1633
      %v1635 = vsel %vm964, %v1601, 0.0
      %1636 = vadd.xlane.f32.xlu0 %v1635
      %v1637 = vpop.xlane.xlu0 %1636
      %v1638 = vsel %vm964, %v1602, 0.0
      %1639 = vadd.xlane.f32.xlu0 %v1638
      %v1640 = vpop.xlane.xlu0 %1639
      %v1641 = vsel %vm964, %v1603, 0.0
      %1642 = vadd.xlane.f32.xlu0 %v1641
      %v1643 = vpop.xlane.xlu0 %1642
      %v1644 = vsel %vm964, %v1604, 0.0
      %1645 = vadd.xlane.f32.xlu0 %v1644
      %v1646 = vpop.xlane.xlu0 %1645
      %v1647 = vsel %vm964, %v1605, 0.0
      %1648 = vadd.xlane.f32.xlu0 %v1647
      %v1649 = vpop.xlane.xlu0 %1648
      %v1650 = vsel %vm964, %v1606, 0.0
      %1651 = vadd.xlane.f32.xlu0 %v1650
      %v1652 = vpop.xlane.xlu0 %1651
      %v1653 = vsel %vm964, %v1607, 0.0
      %1654 = vadd.xlane.f32.xlu0 %v1653
      %v1655 = vpop.xlane.xlu0 %1654
      %v1656 = vmul.f32 %v1610, %v1559
      %v1657 = vmul.f32 %v1613, %v1559
      %v1658 = vmul.f32 %v1616, %v1559
      %v1659 = vmul.f32 %v1619, %v1559
      %v1660 = vmul.f32 %v1622, %v1559
      %v1661 = vmul.f32 %v1625, %v1559
      %v1662 = vmul.f32 %v1628, %v1559
      %v1663 = vmul.f32 %v1631, %v1559
      %v1664 = vmul.f32 %v1634, %v1559
      %v1665 = vmul.f32 %v1637, %v1559
      %v1666 = vmul.f32 %v1640, %v1559
      %v1667 = vmul.f32 %v1643, %v1559
      %v1668 = vmul.f32 %v1646, %v1559
      %v1669 = vmul.f32 %v1649, %v1559
      %v1670 = vmul.f32 %v1652, %v1559
      %v1671 = vmul.f32 %v1655, %v1559
      %v1672 = vadd.f32 %v1656, 1e-05
      %v1673 = vadd.f32 %v1657, 1e-05
      %v1674 = vadd.f32 %v1658, 1e-05
      %v1675 = vadd.f32 %v1659, 1e-05
      %v1676 = vadd.f32 %v1660, 1e-05
      %v1677 = vadd.f32 %v1661, 1e-05
      %v1678 = vadd.f32 %v1662, 1e-05
      %v1679 = vadd.f32 %v1663, 1e-05
      %v1680 = vadd.f32 %v1664, 1e-05
      %v1681 = vadd.f32 %v1665, 1e-05
      %v1682 = vadd.f32 %v1666, 1e-05
      %v1683 = vadd.f32 %v1667, 1e-05
      %v1684 = vadd.f32 %v1668, 1e-05
      %v1685 = vadd.f32 %v1669, 1e-05
      %v1686 = vadd.f32 %v1670, 1e-05
      %v1687 = vadd.f32 %v1671, 1e-05
      %v1688 = vrsqrt.pop %v1672
      %v1689 = vrsqrt.pop %v1673
      %v1690 = vrsqrt.pop %v1674
      %v1691 = vrsqrt.pop %v1675
      %v1692 = vrsqrt.pop %v1676
      %v1693 = vrsqrt.pop %v1677
      %v1694 = vrsqrt.pop %v1678
      %v1695 = vrsqrt.pop %v1679
      %v1696 = vrsqrt.pop %v1680
      %v1697 = vrsqrt.pop %v1681
      %v1698 = vrsqrt.pop %v1682
      %v1699 = vrsqrt.pop %v1683
      %v1700 = vrsqrt.pop %v1684
      %v1701 = vrsqrt.pop %v1685
      %v1702 = vrsqrt.pop %v1686
      %v1703 = vrsqrt.pop %v1687
      %v1704 = vmul.f32 %v1576, %v1688
      %v1705 = vmul.f32 %v1577, %v1689
      %v1706 = vmul.f32 %v1578, %v1690
      %v1707 = vmul.f32 %v1579, %v1691
      %v1708 = vmul.f32 %v1580, %v1692
      %v1709 = vmul.f32 %v1581, %v1693
      %v1710 = vmul.f32 %v1582, %v1694
      %v1711 = vmul.f32 %v1583, %v1695
      %v1712 = vmul.f32 %v1584, %v1696
      %v1713 = vmul.f32 %v1585, %v1697
      %v1714 = vmul.f32 %v1586, %v1698
      %v1715 = vmul.f32 %v1587, %v1699
      %v1716 = vmul.f32 %v1588, %v1700
      %v1717 = vmul.f32 %v1589, %v1701
      %v1718 = vmul.f32 %v1590, %v1702
      %v1719 = vmul.f32 %v1591, %v1703
      %v1720 = vld [vmem:[%s4] sm:$0x1]
      %v1722 = vlaneseq
      %v1723 = vshrl.u32 %v1722, 7
      %v1724 = vsub.s32 0, %v1723
      %v1725 = vrot.slane %v1720, %v1724
      %v1727 = vmul.f32 %v1704, %v1725
      %v1728 = vmul.f32 %v1705, %v1725
      %v1729 = vmul.f32 %v1706, %v1725
      %v1730 = vmul.f32 %v1707, %v1725
      %v1731 = vmul.f32 %v1708, %v1725
      %v1732 = vmul.f32 %v1709, %v1725
      %v1733 = vmul.f32 %v1710, %v1725
      %v1734 = vmul.f32 %v1711, %v1725
      %v1735 = vmul.f32 %v1712, %v1725
      %v1736 = vmul.f32 %v1713, %v1725
      %v1737 = vmul.f32 %v1714, %v1725
      %v1738 = vmul.f32 %v1715, %v1725
      %v1739 = vmul.f32 %v1716, %v1725
      %v1740 = vmul.f32 %v1717, %v1725
      %v1741 = vmul.f32 %v1718, %v1725
      %v1742 = vmul.f32 %v1719, %v1725
      %v1743 = vld [vmem:[%s5] sm:$0x1]
      %v1745 = vlaneseq
      %v1746 = vshrl.u32 %v1745, 7
      %v1747 = vsub.s32 0, %v1746
      %v1748 = vrot.slane %v1743, %v1747
      %v1750 = vadd.f32 %v1727, %v1748
      %v1751 = vadd.f32 %v1728, %v1748
      %v1752 = vadd.f32 %v1729, %v1748
      %v1753 = vadd.f32 %v1730, %v1748
      %v1754 = vadd.f32 %v1731, %v1748
      %v1755 = vadd.f32 %v1732, %v1748
      %v1756 = vadd.f32 %v1733, %v1748
      %v1757 = vadd.f32 %v1734, %v1748
      %v1758 = vadd.f32 %v1735, %v1748
      %v1759 = vadd.f32 %v1736, %v1748
      %v1760 = vadd.f32 %v1737, %v1748
      %v1761 = vadd.f32 %v1738, %v1748
      %v1762 = vadd.f32 %v1739, %v1748
      %v1763 = vadd.f32 %v1740, %v1748
      %v1764 = vadd.f32 %v1741, %v1748
      %v1765 = vadd.f32 %v1742, %v1748
      %1766 = vst.msk [vmem:[%s289] sm:$0xff] %vm964, %v1750
      %1767 = vst.msk [vmem:[%s289 + $0x8] sm:$0xff] %vm964, %v1751
      %1768 = vst.msk [vmem:[%s289 + $0x10] sm:$0xff] %vm964, %v1752
      %1769 = vst.msk [vmem:[%s289 + $0x18] sm:$0xff] %vm964, %v1753
      %1770 = vst.msk [vmem:[%s289 + $0x20] sm:$0xff] %vm964, %v1754
      %1771 = vst.msk [vmem:[%s289 + $0x28] sm:$0xff] %vm964, %v1755
      %1772 = vst.msk [vmem:[%s289 + $0x30] sm:$0xff] %vm964, %v1756
      %1773 = vst.msk [vmem:[%s289 + $0x38] sm:$0xff] %vm964, %v1757
      %1774 = vst.msk [vmem:[%s289 + $0x40] sm:$0xff] %vm964, %v1758
      %1775 = vst.msk [vmem:[%s289 + $0x48] sm:$0xff] %vm964, %v1759
      %1776 = vst.msk [vmem:[%s289 + $0x50] sm:$0xff] %vm964, %v1760
      %1777 = vst.msk [vmem:[%s289 + $0x58] sm:$0xff] %vm964, %v1761
      %1778 = vst.msk [vmem:[%s289 + $0x60] sm:$0xff] %vm964, %v1762
      %1779 = vst.msk [vmem:[%s289 + $0x68] sm:$0xff] %vm964, %v1763
      %1780 = vst.msk [vmem:[%s289 + $0x70] sm:$0xff] %vm964, %v1764
      %1781 = vst.msk [vmem:[%s289 + $0x78] sm:$0xff] %vm964, %v1765
      %s1782 = smul.u32 16, %s22
      %p1783 = scmp.lt.s32.totalorder %s21, 1
      %s1784 = scalar_select %p1783, %s21, 1
      %p1785 = scmp.lt.s32.totalorder %s1782, 15
      %s1786 = scalar_select %p1785, %s1782, 15
      %s1787 = smul.addr %s1784, 16
      %s1788 = sadd.s32 %s1786, %s1787
      %s1789 = smul.addr %s1788, 8
      %s1790 = scalar_lea.vmem %s6, %s1789
      // Predicated region
      $region45: #{tpu_custom_call.1} parent=43 // pred_check
        %p1791 = pneg %p182
      $region46: #{tpu_custom_call.1} parent=43 // pred_check_branch
        %1793 = sbr.rel (%p1791) target = $region48
      $region47: #{tpu_custom_call.1} parent=43 // pred_region
        %s1794 = smul.u32 16, %s22
      $region48: #{tpu_custom_call.1} parent=43 // pred_fallthru
        _
    $region44: #{tpu_custom_call.1} parent=5 // pred_fallthru
      _
    %p1795 = scmp.le.s32.totalorder 2, %s12
    // Predicated region
    $region49: #{tpu_custom_call.1} parent=5 // pred_check
      %p1796 = pneg %p1795
    $region50: #{tpu_custom_call.1} parent=5 // pred_check_branch
      %1798 = sbr.rel (%p1796) target = $region52
    $region51: #{tpu_custom_call.1} parent=5 // pred_region
      %s1799 = ssub.s32 %s12, 2
      // Predicated region
      $region53: #{tpu_custom_call.1} parent=51 // pred_check
        %p1800 = pneg %p188
      $region54: #{tpu_custom_call.1} parent=51 // pred_check_branch
        %1802 = sbr.rel (%p1800) target = $region56
      $region55: #{tpu_custom_call.1} parent=51 // pred_region
        %s1803 = smul.u32 16, %s24
        %p1804 = scmp.lt.s32.totalorder %s23, 1
        %s1805 = scalar_select %p1804, %s23, 1
        %p1806 = scmp.lt.s32.totalorder %s1803, 15
        %s1807 = scalar_select %p1806, %s1803, 15
        %s1808 = smul.addr %s1805, 16
        %s1809 = sadd.s32 %s1807, %s1808
        %s1810 = smul.addr %s1809, 8
        %s1811 = scalar_lea.vmem %s6, %s1810
      $region56: #{tpu_custom_call.1} parent=51 // pred_fallthru
        _
    $region52: #{tpu_custom_call.1} parent=5 // pred_fallthru
      _
  $region6: #{tpu_custom_call.1} parent=0 // loop_footer
    %s16 = sadd.s32 1, %s12
  $region7: #{tpu_custom_call.1} parent=0 // loop_footer_branch
    %11 = sbr.rel target = $region3
  $region8: #{tpu_custom_call.1} parent=0 // loop_exit
    _

</llo_original>
